<compile_context>
chip_gen: v7x
topology: tpu7x:2x2x1
jax: 0.10.0
libtpu: 0.0.40
codegen_flags: <defaults>
</compile_context>

<pallas_src>
import functools

import jax
import jax.numpy as jnp
from jax.experimental import pallas as pl
from jax.experimental.pallas import tpu as pltpu

LN_EPS = 1e-5  # torch.nn.LayerNorm default


def _round_up(x, m):
    return (x + m - 1) // m * m


def _vmem_limit_bytes():
    try:
        cap = pltpu.get_tpu_info().vmem_capacity_bytes
        return int(cap * 3 // 4)
    except Exception:
        return 48 * 1024 * 1024


_VMEM_LIMIT = _vmem_limit_bytes()


def _mlp_tile_t(T, D, budget_bytes=24 * 1024 * 1024):
    """Token-tile size for the MLP kernel: multiple of 8, VMEM-budget capped."""
    cap = max(8, _round_up(T, 8))
    tile = min(512, cap)
    while tile > 8:
        w_bytes = 2 * (D * 4 * D) * 2                       # c_fc + c_proj, bf16
        act_bytes = 2 * 2 * tile * D * 4 + 2 * tile * 4 * D * 4
        if w_bytes + act_bytes <= budget_bytes:
            break
        tile = max(8, _round_up(tile // 2, 8))
    return tile


# ----------------------------- kernels ------------------------------------ #

def _attn_block_kernel(*refs, n_head, causal, has_mask):
    """LN1 + fused QKV + per-head attention + out_proj + residual.

    Grid: one batch element per step.
      x_ref:      (1, L, D)   f32 residual stream
      in_w_ref:   (D, 3D)     bf16 (in_proj_weight.T)
      out_w_ref:  (H, Dh, D)  bf16 (out_proj.weight.T split per head)
      [m_ref]:    (L, L)      additive mask (only when has_mask)
      o_ref:      (1, L, D)   f32
    """
    if has_mask:
        (x_ref, g_ref, b_ref, in_w_ref, in_b_ref,
         out_w_ref, out_b_ref, m_ref, o_ref) = refs
    else:
        (x_ref, g_ref, b_ref, in_w_ref, in_b_ref,
         out_w_ref, out_b_ref, o_ref) = refs
        m_ref = None

    x = x_ref[0].astype(jnp.float32)                        # (L, D)
    L, D = x.shape
    H = n_head
    Dh = D // H

    # LayerNorm (f32 statistics, matches torch eps=1e-5).
    mu = jnp.mean(x, axis=-1, keepdims=True)
    var = jnp.mean((x - mu) ** 2, axis=-1, keepdims=True)
    xn = (x - mu) * jax.lax.rsqrt(var + LN_EPS)
    xn = xn * g_ref[...] + b_ref[...]

    # Fused QKV projection: bf16 operands on the MXU, f32 accumulation.
    qkv = jnp.dot(xn.astype(jnp.bfloat16), in_w_ref[...],
                  preferred_element_type=jnp.float32) + in_b_ref[...]  # (L, 3D)

    # Additive attention bias.
    if causal:
        row = jax.lax.broadcasted_iota(jnp.int32, (L, L), 0)
        col = jax.lax.broadcasted_iota(jnp.int32, (L, L), 1)
        bias = jnp.where(col <= row, 0.0, -1e9).astype(jnp.float32)
    elif has_mask:
        bias = m_ref[...].astype(jnp.float32)
    else:
        bias = None

    scale = float(Dh) ** -0.5
    y = jnp.zeros((L, D), jnp.float32)
    for h in range(H):                                      # static unroll
        q = qkv[:, h * Dh:(h + 1) * Dh].astype(jnp.bfloat16)
        k = qkv[:, D + h * Dh:D + (h + 1) * Dh].astype(jnp.bfloat16)
        v = qkv[:, 2 * D + h * Dh:2 * D + (h + 1) * Dh].astype(jnp.bfloat16)

        # q @ k.T, f32 accumulation.
        s = jax.lax.dot_general(q, k, (((1,), (1,)), ((), ())),
                                preferred_element_type=jnp.float32) * scale
        if bias is not None:
            s = s + bias
        s = s - jnp.max(s, axis=-1, keepdims=True)
        p = jnp.exp(s)
        p = p * pl.reciprocal(jnp.sum(p, axis=-1, keepdims=True), approx=True)

        o = jnp.dot(p.astype(jnp.bfloat16), v,
                    preferred_element_type=jnp.float32)      # (L, Dh)
        # out_proj contribution of this head (also merges heads along D).
        y = y + jnp.dot(o.astype(jnp.bfloat16), out_w_ref[h],
                        preferred_element_type=jnp.float32)  # (L, D)

    o_ref[0] = (x + y + out_b_ref[...]).astype(o_ref.dtype)


def _ln_mlp_kernel(x_ref, g_ref, b_ref, w1_ref, b1_ref, w2_ref, b2_ref, o_ref):
    """LN2 + c_fc + QuickGELU + c_proj + residual over a (TILE_T, D) token tile."""
    x = x_ref[...].astype(jnp.float32)                      # (TILE_T, D)
    mu = jnp.mean(x, axis=-1, keepdims=True)
    var = jnp.mean((x - mu) ** 2, axis=-1, keepdims=True)
    xn = (x - mu) * jax.lax.rsqrt(var + LN_EPS)
    xn = xn * g_ref[...] + b_ref[...]

    h = jnp.dot(xn.astype(jnp.bfloat16), w1_ref[...],
                preferred_element_type=jnp.float32) + b1_ref[...]
    h = h * (1.0 / (1.0 + jnp.exp(-1.702 * h)))             # QuickGELU
    y = jnp.dot(h.astype(jnp.bfloat16), w2_ref[...],
                preferred_element_type=jnp.float32) + b2_ref[...]
    o_ref[...] = (x + y).astype(o_ref.dtype)


# ----------------------------- wrappers ------------------------------------ #

def residual_attention_block(x_nld, p, *, attn_mask=None, causal=False):
    """One CLIP ResidualAttentionBlock. x_nld: (N, L, D) f32."""
    N, L, D = x_nld.shape
    H = p["n_head"]
    Dh = D // H
    use_mask_input = (attn_mask is not None) and (not causal)

    # ---- attention sub-block: grid over batch elements ----
    kernel = functools.partial(_attn_block_kernel, n_head=H,
                               causal=causal, has_mask=use_mask_input)
    in_specs = [
        pl.BlockSpec((1, L, D), lambda n: (n, 0, 0)),       # x (residual stream)
        pl.BlockSpec((1, D), lambda n: (0, 0)),             # ln1 gamma
        pl.BlockSpec((1, D), lambda n: (0, 0)),             # ln1 beta
        pl.BlockSpec((D, 3 * D), lambda n: (0, 0)),         # in_proj weight (bf16)
        pl.BlockSpec((1, 3 * D), lambda n: (0, 0)),         # in_proj bias
        pl.BlockSpec((H, Dh, D), lambda n: (0, 0, 0)),      # out_proj weight (bf16)
        pl.BlockSpec((1, D), lambda n: (0, 0)),             # out_proj bias
    ]
    args = [x_nld, p["ln1_g"], p["ln1_b"], p["in_w"], p["in_b"],
            p["out_w"], p["out_b"]]
    if use_mask_input:
        in_specs.append(pl.BlockSpec((L, L), lambda n: (0, 0)))
        args.append(attn_mask.astype(jnp.float32))

    x_nld = pl.pallas_call(
        kernel,
        out_shape=jax.ShapeDtypeStruct((N, L, D), jnp.float32),
        grid=(N,),
        in_specs=in_specs,
        out_specs=pl.BlockSpec((1, L, D), lambda n: (n, 0, 0)),
        compiler_params=pltpu.CompilerParams(
            dimension_semantics=("parallel",),
            vmem_limit_bytes=_VMEM_LIMIT),
    )(*args)

    # ---- MLP sub-block: grid over token tiles ----
    T = N * L
    x2d = x_nld.reshape(T, D)
    tile = _mlp_tile_t(T, D)
    x2d = pl.pallas_call(
        _ln_mlp_kernel,
        out_shape=jax.ShapeDtypeStruct((T, D), jnp.float32),
        grid=(pl.cdiv(T, tile),),
        in_specs=[
            pl.BlockSpec((tile, D), lambda i: (i, 0)),      # x tile
            pl.BlockSpec((1, D), lambda i: (0, 0)),         # ln2 gamma
            pl.BlockSpec((1, D), lambda i: (0, 0)),         # ln2 beta
            pl.BlockSpec((D, 4 * D), lambda i: (0, 0)),     # c_fc weight (bf16)
            pl.BlockSpec((1, 4 * D), lambda i: (0, 0)),     # c_fc bias
            pl.BlockSpec((4 * D, D), lambda i: (0, 0)),     # c_proj weight (bf16)
            pl.BlockSpec((1, D), lambda i: (0, 0)),         # c_proj bias
        ],
        out_specs=pl.BlockSpec((tile, D), lambda i: (i, 0)),
        compiler_params=pltpu.CompilerParams(
            dimension_semantics=("parallel",),
            vmem_limit_bytes=_VMEM_LIMIT),
    )(x2d, p["ln2_g"], p["ln2_b"], p["fc_w"], p["fc_b"],
      p["proj_w"], p["proj_b"])

    return x2d.reshape(N, L, D)


def transformer_forward(x_lnd, layer_params, attn_mask=None, causal=False):
    """x_lnd: (L, N, D) as in the PyTorch module (batch_first=False)."""
    x = jnp.transpose(x_lnd, (1, 0, 2))                     # (N, L, D)
    for p in layer_params:
        x = residual_attention_block(x, p, attn_mask=attn_mask, causal=causal)
    return jnp.transpose(x, (1, 0, 2))                      # back to (L, N, D)


def init_params(key, width, layers, heads):
    d = width
    dh = d // heads
    bf16 = jnp.bfloat16
    ps = []
    for i in range(layers):
        ks = jax.random.split(jax.random.fold_in(key, i), 8)
        in_w = 0.02 * jax.random.normal(ks[0], (d, 3 * d), jnp.float32)
        out_w = 0.02 * jax.random.normal(ks[2], (d, d), jnp.float32)
        fc_w = 0.02 * jax.random.normal(ks[4], (d, 4 * d), jnp.float32)
        proj_w = 0.02 * jax.random.normal(ks[6], (4 * d, d), jnp.float32)
        p = dict(
            n_head=heads,
            ln1_g=jnp.ones((1, d), jnp.float32),
            ln1_b=jnp.zeros((1, d), jnp.float32),
            # Stored pre-transposed (y = x @ W_t + b) and pre-cast to bf16.
            in_w=in_w.astype(bf16),                          # (D, 3D)
            in_b=0.02 * jax.random.normal(ks[1], (1, 3 * d), jnp.float32),
            out_w=out_w.astype(bf16).reshape(heads, dh, d),  # (H, Dh, D)
            out_b=0.02 * jax.random.normal(ks[3], (1, d), jnp.float32),
            ln2_g=jnp.ones((1, d), jnp.float32),
            ln2_b=jnp.zeros((1, d), jnp.float32),
            fc_w=fc_w.astype(bf16),                          # (D, 4D)
            fc_b=0.02 * jax.random.normal(ks[5], (1, 4 * d), jnp.float32),
            proj_w=proj_w.astype(bf16),                      # (4D, D)
            proj_b=0.02 * jax.random.normal(ks[7], (1, d), jnp.float32),
        )
        ps.append(p)
    return ps


# --------------------------- pure-JAX reference ----------------------------- #

def _ref_block(x, p, mask):
    # f32 reference using the same (bf16-rounded) weight values.
    L, N, D = x.shape
    H = p["n_head"]
    Dh = D // H
    in_w = p["in_w"].astype(jnp.float32)
    out_w = p["out_w"].astype(jnp.float32).reshape(D, D)
    fc_w = p["fc_w"].astype(jnp.float32)
    proj_w = p["proj_w"].astype(jnp.float32)

    def ln(t, g, b):
        mu = t.mean(-1, keepdims=True)
        var = ((t - mu) ** 2).mean(-1, keepdims=True)
        return (t - mu) / jnp.sqrt(var + LN_EPS) * g.reshape(-1) + b.reshape(-1)

    h = ln(x, p["ln1_g"], p["ln1_b"])
    qkv = h @ in_w + p["in_b"].reshape(-1)
    q, k, v = jnp.split(qkv, 3, -1)

    def heads(t):
        return t.reshape(L, N, H, Dh).transpose(1, 2, 0, 3)  # (N, H, L, Dh)

    q, k, v = heads(q) * float(Dh) ** -0.5, heads(k), heads(v)
    s = jnp.einsum("nhld,nhmd->nhlm", q, k)
    if mask is not None:
        s = s + mask
    a = jax.nn.softmax(s, axis=-1)
    o = jnp.einsum("nhlm,nhmd->nhld", a, v).transpose(2, 0, 1, 3).reshape(L, N, D)
    x = x + o @ out_w + p["out_b"].reshape(-1)

    h2 = ln(x, p["ln2_g"], p["ln2_b"])
    h2 = h2 @ fc_w + p["fc_b"].reshape(-1)
    h2 = h2 * jax.nn.sigmoid(1.702 * h2)
    x = x + h2 @ proj_w + p["proj_b"].reshape(-1)
    return x


# --------------------------------- main ------------------------------------ #

if __name__ == "__main__":
    WIDTH, LAYERS, HEADS = 32, 2, 4
    L, N = 8, 2  # (seq_len, batch)

    key = jax.random.PRNGKey(0)
    kx, kp = jax.random.split(key)
    x = jax.random.normal(kx, (L, N, WIDTH), jnp.float32)
    params = init_params(kp, WIDTH, LAYERS, HEADS)

    # CLIP-style causal additive attention mask (explicit form for reference /
    # the array-mask code path).
    idx = jnp.arange(L)
    attn_mask = jnp.where(idx[None, :] <= idx[:, None], 0.0, -1e9).astype(jnp.float32)

    # Path 1: causal mask generated in-kernel via broadcasted_iota.
    out = transformer_forward(x, params, causal=True)
    out = jax.block_until_ready(out)

    # Path 2: arbitrary additive mask passed as an array input.
    out2 = transformer_forward(x, params, attn_mask=attn_mask)
    out2 = jax.block_until_ready(out2)

    ref = x
    for p in params:
        ref = _ref_block(ref, p, attn_mask)

    assert out.shape == (L, N, WIDTH)
    err1 = float(jnp.abs(out - ref).max())
    err2 = float(jnp.abs(out2 - ref).max())
    # bf16 MXU operands (f32 accumulation / f32 LN & softmax stats) vs f32 ref.
    assert jnp.allclose(out, ref, atol=2e-2, rtol=2e-2), err1
    assert jnp.allclose(out2, ref, atol=2e-2, rtol=2e-2), err2
    print("KERNEL_OK")
</pallas_src>

<mosaic_0001>
module attributes {stable_mosaic.version = 11 : i64} {
  func.func @_attn_block_kernel(%arg0: i32, %arg1: memref<1x8x32xf32, #tpu.memory_space<vmem>>, %arg2: memref<1x32xf32, #tpu.memory_space<vmem>>, %arg3: memref<1x32xf32, #tpu.memory_space<vmem>>, %arg4: memref<32x96xbf16, #tpu.memory_space<vmem>>, %arg5: memref<1x96xf32, #tpu.memory_space<vmem>>, %arg6: memref<4x8x32xbf16, #tpu.memory_space<vmem>>, %arg7: memref<1x32xf32, #tpu.memory_space<vmem>>, %arg8: memref<1x8x32xf32, #tpu.memory_space<vmem>>) attributes {dimension_semantics = [#tpu.dimension_semantics<parallel>], iteration_bounds = array<i64: 2>, scalar_prefetch = 0 : i64, scratch_operands = 0 : i64, tpu.core_type = #tpu.core_type<tc>, window_params = [{transform_indices = @transform_0, window_bounds = array<i64: 1, 8, 32>}, {pipeline_mode = #tpu.pipeline_mode<synchronous>, transform_indices = @transform_1, window_bounds = array<i64: 1, 32>}, {pipeline_mode = #tpu.pipeline_mode<synchronous>, transform_indices = @transform_2, window_bounds = array<i64: 1, 32>}, {pipeline_mode = #tpu.pipeline_mode<synchronous>, transform_indices = @transform_3, window_bounds = array<i64: 32, 96>}, {pipeline_mode = #tpu.pipeline_mode<synchronous>, transform_indices = @transform_4, window_bounds = array<i64: 1, 96>}, {pipeline_mode = #tpu.pipeline_mode<synchronous>, transform_indices = @transform_5, window_bounds = array<i64: 4, 8, 32>}, {pipeline_mode = #tpu.pipeline_mode<synchronous>, transform_indices = @transform_6, window_bounds = array<i64: 1, 32>}, {transform_indices = @transform_7, window_bounds = array<i64: 1, 8, 32>}]} {
    %c0 = arith.constant 0 : index
    %c0_0 = arith.constant 0 : index
    %c0_1 = arith.constant 0 : index
    %0 = vector.load %arg1[%c0, %c0_0, %c0_1] : memref<1x8x32xf32, #tpu.memory_space<vmem>>, vector<1x8x32xf32>
    %1 = vector.shape_cast %0 : vector<1x8x32xf32> to vector<8x32xf32>
    %cst = arith.constant dense<0.000000e+00> : vector<8xf32>
    %2 = vector.multi_reduction <add>, %1, %cst [1] : vector<8x32xf32> to vector<8xf32>
    %3 = vector.shape_cast %2 : vector<8xf32> to vector<8x1xf32>
    %cst_2 = arith.constant 3.200000e+01 : f32
    %4 = vector.broadcast %cst_2 : f32 to vector<8x1xf32>
    %5 = arith.divf %3, %4 : vector<8x1xf32>
    %6 = vector.broadcast %5 : vector<8x1xf32> to vector<8x32xf32>
    %7 = arith.subf %1, %6 : vector<8x32xf32>
    %8 = arith.mulf %7, %7 : vector<8x32xf32>
    %cst_3 = arith.constant dense<0.000000e+00> : vector<8xf32>
    %9 = vector.multi_reduction <add>, %8, %cst_3 [1] : vector<8x32xf32> to vector<8xf32>
    %10 = vector.shape_cast %9 : vector<8xf32> to vector<8x1xf32>
    %cst_4 = arith.constant 3.200000e+01 : f32
    %11 = vector.broadcast %cst_4 : f32 to vector<8x1xf32>
    %12 = arith.divf %10, %11 : vector<8x1xf32>
    %13 = vector.broadcast %5 : vector<8x1xf32> to vector<8x32xf32>
    %14 = arith.subf %1, %13 : vector<8x32xf32>
    %cst_5 = arith.constant 9.99999974E-6 : f32
    %15 = vector.broadcast %cst_5 : f32 to vector<8x1xf32>
    %16 = arith.addf %12, %15 : vector<8x1xf32>
    %17 = math.rsqrt %16 : vector<8x1xf32>
    %18 = vector.broadcast %17 : vector<8x1xf32> to vector<8x32xf32>
    %19 = arith.mulf %14, %18 : vector<8x32xf32>
    %c0_6 = arith.constant 0 : index
    %c0_7 = arith.constant 0 : index
    %20 = vector.load %arg2[%c0_6, %c0_7] : memref<1x32xf32, #tpu.memory_space<vmem>>, vector<1x32xf32>
    %21 = vector.broadcast %20 : vector<1x32xf32> to vector<8x32xf32>
    %22 = arith.mulf %19, %21 : vector<8x32xf32>
    %c0_8 = arith.constant 0 : index
    %c0_9 = arith.constant 0 : index
    %23 = vector.load %arg3[%c0_8, %c0_9] : memref<1x32xf32, #tpu.memory_space<vmem>>, vector<1x32xf32>
    %24 = vector.broadcast %23 : vector<1x32xf32> to vector<8x32xf32>
    %25 = arith.addf %22, %24 : vector<8x32xf32>
    %26 = arith.truncf %25 : vector<8x32xf32> to vector<8x32xbf16>
    %c0_10 = arith.constant 0 : index
    %c0_11 = arith.constant 0 : index
    %27 = vector.load %arg4[%c0_10, %c0_11] : memref<32x96xbf16, #tpu.memory_space<vmem>>, vector<32x96xbf16>
    %cst_12 = arith.constant dense<0.000000e+00> : vector<8x96xf32>
    %28 = tpu.matmul %26, %27, %cst_12 {dimension_numbers = #tpu.dot_dimension_numbers<[1], [0], [0], [1], [0, 0, 1, 1], [], []>} : vector<8x32xbf16>, vector<32x96xbf16>, vector<8x96xf32> -> vector<8x96xf32>
    %c0_13 = arith.constant 0 : index
    %c0_14 = arith.constant 0 : index
    %29 = vector.load %arg5[%c0_13, %c0_14] : memref<1x96xf32, #tpu.memory_space<vmem>>, vector<1x96xf32>
    %30 = vector.broadcast %29 : vector<1x96xf32> to vector<8x96xf32>
    %31 = arith.addf %28, %30 : vector<8x96xf32>
    %32 = tpu.iota {dimensions = array<i32: 0>} : vector<8x8xi32>
    %33 = tpu.iota {dimensions = array<i32: 1>} : vector<8x8xi32>
    %34 = arith.cmpi sle, %33, %32 : vector<8x8xi32>
    %cst_15 = arith.constant 0.000000e+00 : f32
    %cst_16 = arith.constant -1.000000e+09 : f32
    %35 = vector.broadcast %cst_15 : f32 to vector<8x8xf32>
    %36 = vector.broadcast %cst_16 : f32 to vector<8x8xf32>
    %37 = arith.select %34, %35, %36 : vector<8x8xi1>, vector<8x8xf32>
    %cst_17 = arith.constant 0.000000e+00 : f32
    %38 = vector.broadcast %cst_17 : f32 to vector<8x32xf32>
    %39 = vector.extract_strided_slice %31 {offsets = [0, 0], sizes = [8, 8], strides = [1, 1]} : vector<8x96xf32> to vector<8x8xf32>
    %40 = arith.truncf %39 : vector<8x8xf32> to vector<8x8xbf16>
    %41 = vector.extract_strided_slice %31 {offsets = [0, 32], sizes = [8, 8], strides = [1, 1]} : vector<8x96xf32> to vector<8x8xf32>
    %42 = arith.truncf %41 : vector<8x8xf32> to vector<8x8xbf16>
    %43 = vector.extract_strided_slice %31 {offsets = [0, 64], sizes = [8, 8], strides = [1, 1]} : vector<8x96xf32> to vector<8x8xf32>
    %44 = arith.truncf %43 : vector<8x8xf32> to vector<8x8xbf16>
    %cst_18 = arith.constant dense<0.000000e+00> : vector<8x8xf32>
    %45 = tpu.matmul %40, %42, %cst_18 {dimension_numbers = #tpu.dot_dimension_numbers<[1], [1], [0], [0], [0, 0, 1, 0], [], []>} : vector<8x8xbf16>, vector<8x8xbf16>, vector<8x8xf32> -> vector<8x8xf32>
    %cst_19 = arith.constant 0.353553385 : f32
    %46 = vector.broadcast %cst_19 : f32 to vector<8x8xf32>
    %47 = arith.mulf %45, %46 : vector<8x8xf32>
    %48 = arith.addf %47, %37 : vector<8x8xf32>
    %cst_20 = arith.constant dense<0xFF800000> : vector<8xf32>
    %49 = vector.multi_reduction <maximumf>, %48, %cst_20 [1] : vector<8x8xf32> to vector<8xf32>
    %50 = vector.shape_cast %49 : vector<8xf32> to vector<8x1xf32>
    %51 = vector.broadcast %50 : vector<8x1xf32> to vector<8x8xf32>
    %52 = arith.subf %48, %51 : vector<8x8xf32>
    %53 = math.exp %52 : vector<8x8xf32>
    %cst_21 = arith.constant dense<0.000000e+00> : vector<8xf32>
    %54 = vector.multi_reduction <add>, %53, %cst_21 [1] : vector<8x8xf32> to vector<8xf32>
    %55 = vector.shape_cast %54 : vector<8xf32> to vector<8x1xf32>
    %56 = tpu.reciprocal %55 {approx = true} : vector<8x1xf32> -> vector<8x1xf32>
    %57 = vector.broadcast %56 : vector<8x1xf32> to vector<8x8xf32>
    %58 = arith.mulf %53, %57 : vector<8x8xf32>
    %59 = arith.truncf %58 : vector<8x8xf32> to vector<8x8xbf16>
    %cst_22 = arith.constant dense<0.000000e+00> : vector<8x8xf32>
    %60 = tpu.matmul %59, %44, %cst_22 {dimension_numbers = #tpu.dot_dimension_numbers<[1], [0], [0], [1], [0, 0, 1, 1], [], []>} : vector<8x8xbf16>, vector<8x8xbf16>, vector<8x8xf32> -> vector<8x8xf32>
    %61 = arith.truncf %60 : vector<8x8xf32> to vector<8x8xbf16>
    %c0_23 = arith.constant 0 : index
    %c0_24 = arith.constant 0 : index
    %c0_25 = arith.constant 0 : index
    %62 = vector.load %arg6[%c0_23, %c0_24, %c0_25] : memref<4x8x32xbf16, #tpu.memory_space<vmem>>, vector<1x8x32xbf16>
    %63 = vector.shape_cast %62 : vector<1x8x32xbf16> to vector<8x32xbf16>
    %cst_26 = arith.constant dense<0.000000e+00> : vector<8x32xf32>
    %64 = tpu.matmul %61, %63, %cst_26 {dimension_numbers = #tpu.dot_dimension_numbers<[1], [0], [0], [1], [0, 0, 1, 1], [], []>} : vector<8x8xbf16>, vector<8x32xbf16>, vector<8x32xf32> -> vector<8x32xf32>
    %65 = arith.addf %38, %64 : vector<8x32xf32>
    %66 = vector.extract_strided_slice %31 {offsets = [0, 8], sizes = [8, 8], strides = [1, 1]} : vector<8x96xf32> to vector<8x8xf32>
    %67 = arith.truncf %66 : vector<8x8xf32> to vector<8x8xbf16>
    %68 = vector.extract_strided_slice %31 {offsets = [0, 40], sizes = [8, 8], strides = [1, 1]} : vector<8x96xf32> to vector<8x8xf32>
    %69 = arith.truncf %68 : vector<8x8xf32> to vector<8x8xbf16>
    %70 = vector.extract_strided_slice %31 {offsets = [0, 72], sizes = [8, 8], strides = [1, 1]} : vector<8x96xf32> to vector<8x8xf32>
    %71 = arith.truncf %70 : vector<8x8xf32> to vector<8x8xbf16>
    %cst_27 = arith.constant dense<0.000000e+00> : vector<8x8xf32>
    %72 = tpu.matmul %67, %69, %cst_27 {dimension_numbers = #tpu.dot_dimension_numbers<[1], [1], [0], [0], [0, 0, 1, 0], [], []>} : vector<8x8xbf16>, vector<8x8xbf16>, vector<8x8xf32> -> vector<8x8xf32>
    %cst_28 = arith.constant 0.353553385 : f32
    %73 = vector.broadcast %cst_28 : f32 to vector<8x8xf32>
    %74 = arith.mulf %72, %73 : vector<8x8xf32>
    %75 = arith.addf %74, %37 : vector<8x8xf32>
    %cst_29 = arith.constant dense<0xFF800000> : vector<8xf32>
    %76 = vector.multi_reduction <maximumf>, %75, %cst_29 [1] : vector<8x8xf32> to vector<8xf32>
    %77 = vector.shape_cast %76 : vector<8xf32> to vector<8x1xf32>
    %78 = vector.broadcast %77 : vector<8x1xf32> to vector<8x8xf32>
    %79 = arith.subf %75, %78 : vector<8x8xf32>
    %80 = math.exp %79 : vector<8x8xf32>
    %cst_30 = arith.constant dense<0.000000e+00> : vector<8xf32>
    %81 = vector.multi_reduction <add>, %80, %cst_30 [1] : vector<8x8xf32> to vector<8xf32>
    %82 = vector.shape_cast %81 : vector<8xf32> to vector<8x1xf32>
    %83 = tpu.reciprocal %82 {approx = true} : vector<8x1xf32> -> vector<8x1xf32>
    %84 = vector.broadcast %83 : vector<8x1xf32> to vector<8x8xf32>
    %85 = arith.mulf %80, %84 : vector<8x8xf32>
    %86 = arith.truncf %85 : vector<8x8xf32> to vector<8x8xbf16>
    %cst_31 = arith.constant dense<0.000000e+00> : vector<8x8xf32>
    %87 = tpu.matmul %86, %71, %cst_31 {dimension_numbers = #tpu.dot_dimension_numbers<[1], [0], [0], [1], [0, 0, 1, 1], [], []>} : vector<8x8xbf16>, vector<8x8xbf16>, vector<8x8xf32> -> vector<8x8xf32>
    %88 = arith.truncf %87 : vector<8x8xf32> to vector<8x8xbf16>
    %c1 = arith.constant 1 : index
    %c0_32 = arith.constant 0 : index
    %c0_33 = arith.constant 0 : index
    %89 = vector.load %arg6[%c1, %c0_32, %c0_33] : memref<4x8x32xbf16, #tpu.memory_space<vmem>>, vector<1x8x32xbf16>
    %90 = vector.shape_cast %89 : vector<1x8x32xbf16> to vector<8x32xbf16>
    %cst_34 = arith.constant dense<0.000000e+00> : vector<8x32xf32>
    %91 = tpu.matmul %88, %90, %cst_34 {dimension_numbers = #tpu.dot_dimension_numbers<[1], [0], [0], [1], [0, 0, 1, 1], [], []>} : vector<8x8xbf16>, vector<8x32xbf16>, vector<8x32xf32> -> vector<8x32xf32>
    %92 = arith.addf %65, %91 : vector<8x32xf32>
    %93 = vector.extract_strided_slice %31 {offsets = [0, 16], sizes = [8, 8], strides = [1, 1]} : vector<8x96xf32> to vector<8x8xf32>
    %94 = arith.truncf %93 : vector<8x8xf32> to vector<8x8xbf16>
    %95 = vector.extract_strided_slice %31 {offsets = [0, 48], sizes = [8, 8], strides = [1, 1]} : vector<8x96xf32> to vector<8x8xf32>
    %96 = arith.truncf %95 : vector<8x8xf32> to vector<8x8xbf16>
    %97 = vector.extract_strided_slice %31 {offsets = [0, 80], sizes = [8, 8], strides = [1, 1]} : vector<8x96xf32> to vector<8x8xf32>
    %98 = arith.truncf %97 : vector<8x8xf32> to vector<8x8xbf16>
    %cst_35 = arith.constant dense<0.000000e+00> : vector<8x8xf32>
    %99 = tpu.matmul %94, %96, %cst_35 {dimension_numbers = #tpu.dot_dimension_numbers<[1], [1], [0], [0], [0, 0, 1, 0], [], []>} : vector<8x8xbf16>, vector<8x8xbf16>, vector<8x8xf32> -> vector<8x8xf32>
    %cst_36 = arith.constant 0.353553385 : f32
    %100 = vector.broadcast %cst_36 : f32 to vector<8x8xf32>
    %101 = arith.mulf %99, %100 : vector<8x8xf32>
    %102 = arith.addf %101, %37 : vector<8x8xf32>
    %cst_37 = arith.constant dense<0xFF800000> : vector<8xf32>
    %103 = vector.multi_reduction <maximumf>, %102, %cst_37 [1] : vector<8x8xf32> to vector<8xf32>
    %104 = vector.shape_cast %103 : vector<8xf32> to vector<8x1xf32>
    %105 = vector.broadcast %104 : vector<8x1xf32> to vector<8x8xf32>
    %106 = arith.subf %102, %105 : vector<8x8xf32>
    %107 = math.exp %106 : vector<8x8xf32>
    %cst_38 = arith.constant dense<0.000000e+00> : vector<8xf32>
    %108 = vector.multi_reduction <add>, %107, %cst_38 [1] : vector<8x8xf32> to vector<8xf32>
    %109 = vector.shape_cast %108 : vector<8xf32> to vector<8x1xf32>
    %110 = tpu.reciprocal %109 {approx = true} : vector<8x1xf32> -> vector<8x1xf32>
    %111 = vector.broadcast %110 : vector<8x1xf32> to vector<8x8xf32>
    %112 = arith.mulf %107, %111 : vector<8x8xf32>
    %113 = arith.truncf %112 : vector<8x8xf32> to vector<8x8xbf16>
    %cst_39 = arith.constant dense<0.000000e+00> : vector<8x8xf32>
    %114 = tpu.matmul %113, %98, %cst_39 {dimension_numbers = #tpu.dot_dimension_numbers<[1], [0], [0], [1], [0, 0, 1, 1], [], []>} : vector<8x8xbf16>, vector<8x8xbf16>, vector<8x8xf32> -> vector<8x8xf32>
    %115 = arith.truncf %114 : vector<8x8xf32> to vector<8x8xbf16>
    %c2 = arith.constant 2 : index
    %c0_40 = arith.constant 0 : index
    %c0_41 = arith.constant 0 : index
    %116 = vector.load %arg6[%c2, %c0_40, %c0_41] : memref<4x8x32xbf16, #tpu.memory_space<vmem>>, vector<1x8x32xbf16>
    %117 = vector.shape_cast %116 : vector<1x8x32xbf16> to vector<8x32xbf16>
    %cst_42 = arith.constant dense<0.000000e+00> : vector<8x32xf32>
    %118 = tpu.matmul %115, %117, %cst_42 {dimension_numbers = #tpu.dot_dimension_numbers<[1], [0], [0], [1], [0, 0, 1, 1], [], []>} : vector<8x8xbf16>, vector<8x32xbf16>, vector<8x32xf32> -> vector<8x32xf32>
    %119 = arith.addf %92, %118 : vector<8x32xf32>
    %120 = vector.extract_strided_slice %31 {offsets = [0, 24], sizes = [8, 8], strides = [1, 1]} : vector<8x96xf32> to vector<8x8xf32>
    %121 = arith.truncf %120 : vector<8x8xf32> to vector<8x8xbf16>
    %122 = vector.extract_strided_slice %31 {offsets = [0, 56], sizes = [8, 8], strides = [1, 1]} : vector<8x96xf32> to vector<8x8xf32>
    %123 = arith.truncf %122 : vector<8x8xf32> to vector<8x8xbf16>
    %124 = vector.extract_strided_slice %31 {offsets = [0, 88], sizes = [8, 8], strides = [1, 1]} : vector<8x96xf32> to vector<8x8xf32>
    %125 = arith.truncf %124 : vector<8x8xf32> to vector<8x8xbf16>
    %cst_43 = arith.constant dense<0.000000e+00> : vector<8x8xf32>
    %126 = tpu.matmul %121, %123, %cst_43 {dimension_numbers = #tpu.dot_dimension_numbers<[1], [1], [0], [0], [0, 0, 1, 0], [], []>} : vector<8x8xbf16>, vector<8x8xbf16>, vector<8x8xf32> -> vector<8x8xf32>
    %cst_44 = arith.constant 0.353553385 : f32
    %127 = vector.broadcast %cst_44 : f32 to vector<8x8xf32>
    %128 = arith.mulf %126, %127 : vector<8x8xf32>
    %129 = arith.addf %128, %37 : vector<8x8xf32>
    %cst_45 = arith.constant dense<0xFF800000> : vector<8xf32>
    %130 = vector.multi_reduction <maximumf>, %129, %cst_45 [1] : vector<8x8xf32> to vector<8xf32>
    %131 = vector.shape_cast %130 : vector<8xf32> to vector<8x1xf32>
    %132 = vector.broadcast %131 : vector<8x1xf32> to vector<8x8xf32>
    %133 = arith.subf %129, %132 : vector<8x8xf32>
    %134 = math.exp %133 : vector<8x8xf32>
    %cst_46 = arith.constant dense<0.000000e+00> : vector<8xf32>
    %135 = vector.multi_reduction <add>, %134, %cst_46 [1] : vector<8x8xf32> to vector<8xf32>
    %136 = vector.shape_cast %135 : vector<8xf32> to vector<8x1xf32>
    %137 = tpu.reciprocal %136 {approx = true} : vector<8x1xf32> -> vector<8x1xf32>
    %138 = vector.broadcast %137 : vector<8x1xf32> to vector<8x8xf32>
    %139 = arith.mulf %134, %138 : vector<8x8xf32>
    %140 = arith.truncf %139 : vector<8x8xf32> to vector<8x8xbf16>
    %cst_47 = arith.constant dense<0.000000e+00> : vector<8x8xf32>
    %141 = tpu.matmul %140, %125, %cst_47 {dimension_numbers = #tpu.dot_dimension_numbers<[1], [0], [0], [1], [0, 0, 1, 1], [], []>} : vector<8x8xbf16>, vector<8x8xbf16>, vector<8x8xf32> -> vector<8x8xf32>
    %142 = arith.truncf %141 : vector<8x8xf32> to vector<8x8xbf16>
    %c3 = arith.constant 3 : index
    %c0_48 = arith.constant 0 : index
    %c0_49 = arith.constant 0 : index
    %143 = vector.load %arg6[%c3, %c0_48, %c0_49] : memref<4x8x32xbf16, #tpu.memory_space<vmem>>, vector<1x8x32xbf16>
    %144 = vector.shape_cast %143 : vector<1x8x32xbf16> to vector<8x32xbf16>
    %cst_50 = arith.constant dense<0.000000e+00> : vector<8x32xf32>
    %145 = tpu.matmul %142, %144, %cst_50 {dimension_numbers = #tpu.dot_dimension_numbers<[1], [0], [0], [1], [0, 0, 1, 1], [], []>} : vector<8x8xbf16>, vector<8x32xbf16>, vector<8x32xf32> -> vector<8x32xf32>
    %146 = arith.addf %119, %145 : vector<8x32xf32>
    %147 = arith.addf %1, %146 : vector<8x32xf32>
    %c0_51 = arith.constant 0 : index
    %c0_52 = arith.constant 0 : index
    %148 = vector.load %arg7[%c0_51, %c0_52] : memref<1x32xf32, #tpu.memory_space<vmem>>, vector<1x32xf32>
    %149 = vector.broadcast %148 : vector<1x32xf32> to vector<8x32xf32>
    %150 = arith.addf %147, %149 : vector<8x32xf32>
    %c0_53 = arith.constant 0 : index
    %c0_54 = arith.constant 0 : index
    %c0_55 = arith.constant 0 : index
    %151 = vector.load %arg8[%c0_53, %c0_54, %c0_55] : memref<1x8x32xf32, #tpu.memory_space<vmem>>, vector<1x8x32xf32>
    %152 = vector.shape_cast %151 : vector<1x8x32xf32> to vector<8x32xf32>
    %153 = vector.shape_cast %150 : vector<8x32xf32> to vector<1x8x32xf32>
    tpu.vector_store %arg8[%c0_53, %c0_54, %c0_55], %153 {strides = array<i32>} : memref<1x8x32xf32, #tpu.memory_space<vmem>>, vector<1x8x32xf32>,
    return
  }
  func.func @transform_0(%arg0: i32) -> (i32, i32, i32) {
    %c0_i32 = arith.constant 0 : i32
    %c0_i32_0 = arith.constant 0 : i32
    %c0_i32_1 = arith.constant 0 : i32
    return %arg0, %c0_i32, %c0_i32_0 : i32, i32, i32
  }
  func.func @transform_1(%arg0: i32) -> (i32, i32) {
    %c0_i32 = arith.constant 0 : i32
    %c0_i32_0 = arith.constant 0 : i32
    %c0_i32_1 = arith.constant 0 : i32
    return %c0_i32, %c0_i32_0 : i32, i32
  }
  func.func @transform_2(%arg0: i32) -> (i32, i32) {
    %c0_i32 = arith.constant 0 : i32
    %c0_i32_0 = arith.constant 0 : i32
    %c0_i32_1 = arith.constant 0 : i32
    return %c0_i32, %c0_i32_0 : i32, i32
  }
  func.func @transform_3(%arg0: i32) -> (i32, i32) {
    %c0_i32 = arith.constant 0 : i32
    %c0_i32_0 = arith.constant 0 : i32
    %c0_i32_1 = arith.constant 0 : i32
    return %c0_i32, %c0_i32_0 : i32, i32
  }
  func.func @transform_4(%arg0: i32) -> (i32, i32) {
    %c0_i32 = arith.constant 0 : i32
    %c0_i32_0 = arith.constant 0 : i32
    %c0_i32_1 = arith.constant 0 : i32
    return %c0_i32, %c0_i32_0 : i32, i32
  }
  func.func @transform_5(%arg0: i32) -> (i32, i32, i32) {
    %c0_i32 = arith.constant 0 : i32
    %c0_i32_0 = arith.constant 0 : i32
    %c0_i32_1 = arith.constant 0 : i32
    %c0_i32_2 = arith.constant 0 : i32
    return %c0_i32, %c0_i32_0, %c0_i32_1 : i32, i32, i32
  }
  func.func @transform_6(%arg0: i32) -> (i32, i32) {
    %c0_i32 = arith.constant 0 : i32
    %c0_i32_0 = arith.constant 0 : i32
    %c0_i32_1 = arith.constant 0 : i32
    return %c0_i32, %c0_i32_0 : i32, i32
  }
  func.func @transform_7(%arg0: i32) -> (i32, i32, i32) {
    %c0_i32 = arith.constant 0 : i32
    %c0_i32_0 = arith.constant 0 : i32
    %c0_i32_1 = arith.constant 0 : i32
    return %arg0, %c0_i32, %c0_i32_0 : i32, i32, i32
  }
}

</mosaic_0001>

<llo_original>
// kernel: tpu_custom_call.1
$region0: #{tpu_custom_call.1}
  #allocation0 [shape = 'u32[]', space=smem, size = 0x4, offset = 0x4, fixed_abs, tag = 'smem constant byte address 0x4 - core index']
  #allocation1 [shape = 'u32[144,128]{1,0:T(1,128)}', space=vmem, size = 0x12000, scoped, tag = 'internal scratch']
  %s0 = inlined_call_operand.hbm [shape: f32[2,8,32], index: 0, kind: input, shape index: {}]
  %s1 = inlined_call_operand.vmem [shape: f32[1,32], index: 1, kind: input, shape index: {}]
  %s2 = inlined_call_operand.vmem [shape: f32[1,32], index: 2, kind: input, shape index: {}]
  %s3 = inlined_call_operand.hbm [shape: bf16[32,96], index: 3, kind: input, shape index: {}]
  %s4 = inlined_call_operand.hbm [shape: f32[1,96], index: 4, kind: input, shape index: {}]
  %s5 = inlined_call_operand.vmem [shape: bf16[4,8,32], index: 5, kind: input, shape index: {}]
  %s6 = inlined_call_operand.vmem [shape: f32[1,32], index: 6, kind: input, shape index: {}]
  %s7 = inlined_call_operand.hbm [shape: f32[2,8,32], index: 7, kind: output, shape index: {}]
  %s8 = sld [smem:[#allocation0]]
  $region73: #{tpu_custom_call.1} parent=0
    _
  %s10 = ssub.s32 1, %s8
  %s11 = scalar_select 0, %s10, %s8
  $region1: #{tpu_custom_call.1} parent=0
    #allocation2 [shape = 'u8[8192]{0}', space=vmem, size = 0x2000, scoped, tag = 'input window, operand 0']
    #allocation3 [shape = 's32[2]{0}', space=sflag, size = 0x8, scoped, tag = 'scoped memory for tpu_custom_call.1']
    #allocation4 [shape = 's32[2]{0}', space=sflag, size = 0x8, scoped, tag = 'scoped memory for tpu_custom_call.1']
    #allocation5 [shape = 'u8[8192]{0}', space=vmem, size = 0x2000, scoped, tag = 'input window, operand 3, single buffered']
    #allocation6 [shape = 's32[1]{0}', space=sflag, size = 0x4, scoped, tag = 'scoped memory for tpu_custom_call.1']
    #allocation7 [shape = 'u8[512]{0}', space=vmem, size = 0x400, scoped, tag = 'input window, operand 4, single buffered']
    #allocation8 [shape = 'u8[8192]{0}', space=vmem, size = 0x2000, scoped, tag = 'output window, operand 0']
    %12 = vsyncpa [#allocation3], 0
    %s13 = scalar_lea.sflag [#allocation3], 1
    %14 = vsyncpa %s13, 0
    %15 = vsyncpa [#allocation6], 0
    %16 = vsyncpa [#allocation4], 0
    %s17 = scalar_lea.sflag [#allocation4], 1
    %18 = vsyncpa %s17, 0
    loop: start=0, step=1, limit=4
    $region2: #{tpu_custom_call.1} parent=1 // loop_pre_header
      _
    $region3: #{tpu_custom_call.1} parent=1 // loop_header
      %s20 = sphi 0, %s24
      %p21 = scmp.ge.s32.totalorder %s20, 4
      %s30 = sphi 0, %s32
      %s33 = sphi 0, %s30
      %s34 = sphi 0, %s33
      %s50 = sphi 0, %s34
      %s54 = sphi 0, %s54
      %s56 = sphi 0, %s54
      %s57 = sphi 0, %s56
      %s71 = sphi 0, %s57
      %s75 = sphi 0, %s75
      %s77 = sphi 0, %s75
      %s78 = sphi 0, %s77
      %s92 = sphi 0, %s78
      %s96 = sphi 0, %s96
      %s98 = sphi 0, %s96
      %s99 = sphi 0, %s98
      %s113 = sphi 0, %s99
      %s117 = sphi 0, %s117
      %s119 = sphi 0, %s117
      %s120 = sphi 0, %s119
      %s134 = sphi 0, %s120
      %s138 = sphi 0, %s138
      %s140 = sphi 0, %s138
      %s141 = sphi 0, %s140
      %s155 = sphi 0, %s141
      %s159 = sphi 0, %s159
      %s161 = sphi 0, %s159
      %s162 = sphi 0, %s161
      %s176 = sphi 0, %s162
      %s182 = sphi 0, %s184
      %s185 = sphi 0, %s182
      %s186 = sphi 0, %s185
      %s202 = sphi 0, %s186
    $region4: #{tpu_custom_call.1} parent=1 // loop_header_branch
      %23 = sbr.rel (%p21) target = $region8
    $region5: #{tpu_custom_call.1} parent=1 // loop_body
      %s25 = ssub.s32 %s20, 1
      %s26 = ssub.s32 %s20, 2
      %s27 = sadd.s32 %s20, 1
      %s28 = ssub.s32 %s20, %s27
      %p29 = scmp.eq.s32.totalorder %s28, 0
      %s31 = sadd.s32 %s30, 1
      %s32 = scalar_select %p29, %s30, %s31
      %p35 = pneg %p29
      %p36 = scmp.eq.s32.totalorder %s20, 1
      %p37 = por %p35, %p36
      %p38 = scmp.ne.s32.totalorder %s30, %s33
      %p39 = scmp.eq.s32.totalorder %s20, 0
      %p40 = por %p38, %p39
      %p41 = scmp.ne.s32.totalorder %s30, %s33
      %p42 = scmp.eq.s32.totalorder %s25, 1
      %p43 = por %p41, %p42
      %p44 = scmp.ne.s32.totalorder %s33, %s34
      %p45 = scmp.eq.s32.totalorder %s25, 0
      %p46 = por %p44, %p45
      %p47 = scmp.ne.s32.totalorder %s33, %s34
      %p48 = scmp.eq.s32.totalorder %s26, 1
      %p49 = por %p47, %p48
      %p51 = scmp.ne.s32.totalorder %s34, %s50
      %p52 = scmp.eq.s32.totalorder %s26, 0
      %p53 = por %p51, %p52
      %s55 = sadd.s32 %s54, 1
      %p58 = scmp.eq.s32.totalorder %s20, 1
      %p59 = scmp.ne.s32.totalorder %s54, %s56
      %p60 = scmp.eq.s32.totalorder %s20, 0
      %p61 = por %p59, %p60
      %p62 = scmp.ne.s32.totalorder %s54, %s56
      %p63 = scmp.eq.s32.totalorder %s25, 1
      %p64 = por %p62, %p63
      %p65 = scmp.ne.s32.totalorder %s56, %s57
      %p66 = scmp.eq.s32.totalorder %s25, 0
      %p67 = por %p65, %p66
      %p68 = scmp.ne.s32.totalorder %s56, %s57
      %p69 = scmp.eq.s32.totalorder %s26, 1
      %p70 = por %p68, %p69
      %p72 = scmp.ne.s32.totalorder %s57, %s71
      %p73 = scmp.eq.s32.totalorder %s26, 0
      %p74 = por %p72, %p73
      %s76 = sadd.s32 %s75, 1
      %p79 = scmp.eq.s32.totalorder %s20, 1
      %p80 = scmp.ne.s32.totalorder %s75, %s77
      %p81 = scmp.eq.s32.totalorder %s20, 0
      %p82 = por %p80, %p81
      %p83 = scmp.ne.s32.totalorder %s75, %s77
      %p84 = scmp.eq.s32.totalorder %s25, 1
      %p85 = por %p83, %p84
      %p86 = scmp.ne.s32.totalorder %s77, %s78
      %p87 = scmp.eq.s32.totalorder %s25, 0
      %p88 = por %p86, %p87
      %p89 = scmp.ne.s32.totalorder %s77, %s78
      %p90 = scmp.eq.s32.totalorder %s26, 1
      %p91 = por %p89, %p90
      %p93 = scmp.ne.s32.totalorder %s78, %s92
      %p94 = scmp.eq.s32.totalorder %s26, 0
      %p95 = por %p93, %p94
      %s97 = sadd.s32 %s96, 1
      %p100 = scmp.eq.s32.totalorder %s20, 1
      %p101 = scmp.ne.s32.totalorder %s96, %s98
      %p102 = scmp.eq.s32.totalorder %s20, 0
      %p103 = por %p101, %p102
      %p104 = scmp.ne.s32.totalorder %s96, %s98
      %p105 = scmp.eq.s32.totalorder %s25, 1
      %p106 = por %p104, %p105
      %p107 = scmp.ne.s32.totalorder %s98, %s99
      %p108 = scmp.eq.s32.totalorder %s25, 0
      %p109 = por %p107, %p108
      %p110 = scmp.ne.s32.totalorder %s98, %s99
      %p111 = scmp.eq.s32.totalorder %s26, 1
      %p112 = por %p110, %p111
      %p114 = scmp.ne.s32.totalorder %s99, %s113
      %p115 = scmp.eq.s32.totalorder %s26, 0
      %p116 = por %p114, %p115
      %s118 = sadd.s32 %s117, 1
      %p121 = scmp.eq.s32.totalorder %s20, 1
      %p122 = scmp.ne.s32.totalorder %s117, %s119
      %p123 = scmp.eq.s32.totalorder %s20, 0
      %p124 = por %p122, %p123
      %p125 = scmp.ne.s32.totalorder %s117, %s119
      %p126 = scmp.eq.s32.totalorder %s25, 1
      %p127 = por %p125, %p126
      %p128 = scmp.ne.s32.totalorder %s119, %s120
      %p129 = scmp.eq.s32.totalorder %s25, 0
      %p130 = por %p128, %p129
      %p131 = scmp.ne.s32.totalorder %s119, %s120
      %p132 = scmp.eq.s32.totalorder %s26, 1
      %p133 = por %p131, %p132
      %p135 = scmp.ne.s32.totalorder %s120, %s134
      %p136 = scmp.eq.s32.totalorder %s26, 0
      %p137 = por %p135, %p136
      %s139 = sadd.s32 %s138, 1
      %p142 = scmp.eq.s32.totalorder %s20, 1
      %p143 = scmp.ne.s32.totalorder %s138, %s140
      %p144 = scmp.eq.s32.totalorder %s20, 0
      %p145 = por %p143, %p144
      %p146 = scmp.ne.s32.totalorder %s138, %s140
      %p147 = scmp.eq.s32.totalorder %s25, 1
      %p148 = por %p146, %p147
      %p149 = scmp.ne.s32.totalorder %s140, %s141
      %p150 = scmp.eq.s32.totalorder %s25, 0
      %p151 = por %p149, %p150
      %p152 = scmp.ne.s32.totalorder %s140, %s141
      %p153 = scmp.eq.s32.totalorder %s26, 1
      %p154 = por %p152, %p153
      %p156 = scmp.ne.s32.totalorder %s141, %s155
      %p157 = scmp.eq.s32.totalorder %s26, 0
      %p158 = por %p156, %p157
      %s160 = sadd.s32 %s159, 1
      %p163 = scmp.eq.s32.totalorder %s20, 1
      %p164 = scmp.ne.s32.totalorder %s159, %s161
      %p165 = scmp.eq.s32.totalorder %s20, 0
      %p166 = por %p164, %p165
      %p167 = scmp.ne.s32.totalorder %s159, %s161
      %p168 = scmp.eq.s32.totalorder %s25, 1
      %p169 = por %p167, %p168
      %p170 = scmp.ne.s32.totalorder %s161, %s162
      %p171 = scmp.eq.s32.totalorder %s25, 0
      %p172 = por %p170, %p171
      %p173 = scmp.ne.s32.totalorder %s161, %s162
      %p174 = scmp.eq.s32.totalorder %s26, 1
      %p175 = por %p173, %p174
      %p177 = scmp.ne.s32.totalorder %s162, %s176
      %p178 = scmp.eq.s32.totalorder %s26, 0
      %p179 = por %p177, %p178
      %s180 = ssub.s32 %s20, %s27
      %p181 = scmp.eq.s32.totalorder %s180, 0
      %s183 = sadd.s32 %s182, 1
      %s184 = scalar_select %p181, %s182, %s183
      %p187 = pneg %p181
      %p188 = scmp.eq.s32.totalorder %s20, 1
      %p189 = por %p187, %p188
      %p190 = scmp.ne.s32.totalorder %s182, %s185
      %p191 = scmp.eq.s32.totalorder %s20, 0
      %p192 = por %p190, %p191
      %p193 = scmp.ne.s32.totalorder %s182, %s185
      %p194 = scmp.eq.s32.totalorder %s25, 1
      %p195 = por %p193, %p194
      %p196 = scmp.ne.s32.totalorder %s185, %s186
      %p197 = scmp.eq.s32.totalorder %s25, 0
      %p198 = por %p196, %p197
      %p199 = scmp.ne.s32.totalorder %s185, %s186
      %p200 = scmp.eq.s32.totalorder %s26, 1
      %p201 = por %p199, %p200
      %p203 = scmp.ne.s32.totalorder %s186, %s202
      %p204 = scmp.eq.s32.totalorder %s26, 0
      %p205 = por %p203, %p204
      %p206 = scmp.le.s32.totalorder 1, %s20
      %p207 = scmp.lt.s32.totalorder %s20, 3
      %p208 = pnand %p206, %p207
      %p209 = pneg %p208
      // Predicated region
      $region9: #{tpu_custom_call.1} parent=5 // pred_check
        _
      $region10: #{tpu_custom_call.1} parent=5 // pred_check_branch
        %211 = sbr.rel (%p208) target = $region12
      $region11: #{tpu_custom_call.1} parent=5 // pred_region
        %s212 = ssub.s32 %s20, 1
        // Predicated region
        $region13: #{tpu_custom_call.1} parent=11 // pred_check
          %p213 = pneg %p67
        $region14: #{tpu_custom_call.1} parent=11 // pred_check_branch
          %215 = sbr.rel (%p213) target = $region16
        $region15: #{tpu_custom_call.1} parent=11 // pred_region
          _
        $region16: #{tpu_custom_call.1} parent=11 // pred_fallthru
          _
        // Predicated region
        $region17: #{tpu_custom_call.1} parent=11 // pred_check
          %p216 = pneg %p88
        $region18: #{tpu_custom_call.1} parent=11 // pred_check_branch
          %218 = sbr.rel (%p216) target = $region20
        $region19: #{tpu_custom_call.1} parent=11 // pred_region
          _
        $region20: #{tpu_custom_call.1} parent=11 // pred_fallthru
          _
        // Predicated region
        $region21: #{tpu_custom_call.1} parent=11 // pred_check
          %p219 = pneg %p109
        $region22: #{tpu_custom_call.1} parent=11 // pred_check_branch
          %221 = sbr.rel (%p219) target = $region24
        $region23: #{tpu_custom_call.1} parent=11 // pred_region
          %s223 = ssub.s32 256, 256
          %224 = vsyncadd [#allocation6], %s223
          %s225 = sshll.u32 [#allocation5], 4
          %s226 = int_to_ptr.vmem [resolvable:$true] %s225
          %231 = dma.hbm_to_vmem [thread:$0]  %s3, 256, %s226, [#allocation6], 64, 64, 4
        $region24: #{tpu_custom_call.1} parent=11 // pred_fallthru
          _
        // Predicated region
        $region25: #{tpu_custom_call.1} parent=11 // pred_check
          %p232 = pneg %p130
        $region26: #{tpu_custom_call.1} parent=11 // pred_check_branch
          %234 = sbr.rel (%p232) target = $region28
        $region27: #{tpu_custom_call.1} parent=11 // pred_region
          %s236 = ssub.s32 16, 16
          %237 = vsyncadd [#allocation6], %s236
          %s239 = sshll.u32 [#allocation7], 4
          %s240 = int_to_ptr.vmem [resolvable:$true] %s239
          %242 = dma.hbm_to_vmem [thread:$0]  %s4, 16, %s240, [#allocation6]
        $region28: #{tpu_custom_call.1} parent=11 // pred_fallthru
          _
        // Predicated region
        $region29: #{tpu_custom_call.1} parent=11 // pred_check
          %p243 = pneg %p151
        $region30: #{tpu_custom_call.1} parent=11 // pred_check_branch
          %245 = sbr.rel (%p243) target = $region32
        $region31: #{tpu_custom_call.1} parent=11 // pred_region
          _
        $region32: #{tpu_custom_call.1} parent=11 // pred_fallthru
          _
        // Predicated region
        $region33: #{tpu_custom_call.1} parent=11 // pred_check
          %p246 = pneg %p172
        $region34: #{tpu_custom_call.1} parent=11 // pred_check_branch
          %248 = sbr.rel (%p246) target = $region36
        $region35: #{tpu_custom_call.1} parent=11 // pred_region
          _
        $region36: #{tpu_custom_call.1} parent=11 // pred_fallthru
          _
      $region12: #{tpu_custom_call.1} parent=5 // pred_fallthru
        _
      %p249 = scmp.lt.s32.totalorder %s20, 2
      // Predicated region
      $region37: #{tpu_custom_call.1} parent=5 // pred_check
        %p250 = pneg %p249
      $region38: #{tpu_custom_call.1} parent=5 // pred_check_branch
        %252 = sbr.rel (%p250) target = $region40
      $region39: #{tpu_custom_call.1} parent=5 // pred_region
        // Predicated region
        $region41: #{tpu_custom_call.1} parent=39 // pred_check
          %p253 = pneg %p40
        $region42: #{tpu_custom_call.1} parent=39 // pred_check_branch
          %255 = sbr.rel (%p253) target = $region44
        $region43: #{tpu_custom_call.1} parent=39 // pred_region
          %s256 = sand.u32 %s30, 1
          %s257 = scalar_lea.sflag [#allocation3], %s256
          %s258 = sand.u32 %s30, 1
          %s259 = smul.addr %s258, 8
          %s260 = scalar_lea.vmem [#allocation2], %s259
          %s262 = ssub.s32 128, 128
          %263 = vsyncadd %s257, %s262
          %s264 = smul.addr %s20, 128
          %s265 = scalar_lea.hbm %s0, %s264
          %s267 = sshll.u32 %s260, 4
          %s268 = int_to_ptr.vmem [resolvable:$true] %s267
          %270 = dma.hbm_to_vmem [thread:$0]  %s265, 128, %s268, %s257
        $region44: #{tpu_custom_call.1} parent=39 // pred_fallthru
          _
      $region40: #{tpu_custom_call.1} parent=5 // pred_fallthru
        _
      %p271 = scmp.le.s32.totalorder 1, %s20
      %p272 = scmp.lt.s32.totalorder %s20, 3
      %p273 = pnand %p271, %p272
      %p274 = pneg %p273
      // Predicated region
      $region45: #{tpu_custom_call.1} parent=5 // pred_check
        _
      $region46: #{tpu_custom_call.1} parent=5 // pred_check_branch
        %276 = sbr.rel (%p273) target = $region48
      $region47: #{tpu_custom_call.1} parent=5 // pred_region
        %s277 = ssub.s32 %s20, 1
        %s278 = sand.u32 %s33, 1
        %s279 = scalar_lea.sflag [#allocation3], %s278
        %s280 = sand.u32 %s33, 1
        %s281 = smul.addr %s280, 8
        %s282 = scalar_lea.vmem [#allocation2], %s281
        // Predicated region
        $region49: #{tpu_custom_call.1} parent=47 // pred_check
          %p283 = pneg %p46
        $region50: #{tpu_custom_call.1} parent=47 // pred_check_branch
          %285 = sbr.rel (%p283) target = $region52
        $region51: #{tpu_custom_call.1} parent=47 // pred_region
          %286 = dma.done %s279, 128
        $region52: #{tpu_custom_call.1} parent=47 // pred_fallthru
          _
        // Predicated region
        $region53: #{tpu_custom_call.1} parent=47 // pred_check
          %p287 = pneg %p109
        $region54: #{tpu_custom_call.1} parent=47 // pred_check_branch
          %289 = sbr.rel (%p287) target = $region56
        $region55: #{tpu_custom_call.1} parent=47 // pred_region
          %290 = dma.done [#allocation6], 256
        $region56: #{tpu_custom_call.1} parent=47 // pred_fallthru
          _
        // Predicated region
        $region57: #{tpu_custom_call.1} parent=47 // pred_check
          %p291 = pneg %p130
        $region58: #{tpu_custom_call.1} parent=47 // pred_check_branch
          %293 = sbr.rel (%p291) target = $region60
        $region59: #{tpu_custom_call.1} parent=47 // pred_region
          %294 = dma.done [#allocation6], 16
        $region60: #{tpu_custom_call.1} parent=47 // pred_fallthru
          _
        %s295 = sand.u32 %s33, 1
        %s296 = scalar_lea.sflag [#allocation3], %s295
        %s297 = sand.u32 %s33, 1
        %s298 = smul.addr %s297, 8
        %s299 = scalar_lea.vmem [#allocation2], %s298
        %p300 = pneg %p46
        %p301 = pneg %p43
        %p302 = pneg %p67
        %p303 = pneg %p64
        %p304 = pneg %p88
        %p305 = pneg %p85
        %p306 = pneg %p109
        %p307 = pneg %p106
        %p308 = pneg %p130
        %p309 = pneg %p127
        %p310 = pneg %p151
        %p311 = pneg %p148
        %p312 = pneg %p172
        %p313 = pneg %p169
        %p314 = pneg %p198
        %p315 = pneg %p195
        %s316 = sand.u32 %s185, 1
        %s317 = scalar_lea.sflag [#allocation4], %s316
        %s318 = sand.u32 %s185, 1
        %s319 = smul.addr %s318, 8
        %s320 = scalar_lea.vmem [#allocation8], %s319
        %v322 = vld [vmem:[%s282] sm:$0xff]
        %vm323 = vcmask 261120
        %v324 = vsel %vm323, %v322, 0.0
        %325 = vadd.xlane.f32.xlu0 %v324
        %v326 = vpop.xlane.xlu0 %325
        %v327 = vrcp.pop 32.0
        %v328 = vmul.f32 %v326, %v327
        %v329 = vsub.f32 %v322, %v328
        %v330 = vmul.f32 %v329, %v329
        %v331 = vsel %vm323, %v330, 0.0
        %332 = vadd.xlane.f32.xlu0 %v331
        %v333 = vpop.xlane.xlu0 %332
        %v334 = vmul.f32 %v333, %v327
        %v335 = vadd.f32 %v334, 1e-05
        %v336 = vrsqrt.pop %v335
        %v337 = vmul.f32 %v329, %v336
        %v338 = vld [vmem:[%s1] sm:$0x1]
        %v340 = vlaneseq
        %v341 = vshrl.u32 %v340, 7
        %v342 = vsub.s32 0, %v341
        %v343 = vrot.slane %v338, %v342
        %v345 = vmul.f32 %v337, %v343
        %v346 = vld [vmem:[%s2] sm:$0x1]
        %v348 = vlaneseq
        %v349 = vshrl.u32 %v348, 7
        %v350 = vsub.s32 0, %v349
        %v351 = vrot.slane %v346, %v350
        %v353 = vadd.f32 %v345, %v351
        %v354 = vpack.c.bf16 %v353, %v353
        %v355 = vld [vmem:[#allocation5] sm:$0xf]
        %v356 = vld [vmem:[#allocation5 + $0x4] sm:$0xf]
        %v357 = vld [vmem:[#allocation5 + $0x8] sm:$0xf]
        %v358 = vld [vmem:[#allocation5 + $0xc] sm:$0xf]
        %v359 = vld [vmem:[#allocation7] sm:$0x1]
        %v361 = vlaneseq
        %v362 = vshrl.u32 %v361, 7
        %v363 = vsub.s32 0, %v362
        %v364 = vrot.slane %v359, %v363
        %v370 = vunpack.c.l.b16 %v355
        %v371 = vunpack.c.l.b16 %v356
        %v372 = vunpack.c.l.b16 %v357
        %v373 = vunpack.c.l.b16 %v358
        %v374 = vpack.c.b16 %v371, %v370
        %v375 = vpack.c.b16 %v373, %v372
        %v379 = vsel %vm323, %v354, 0
        %381 = vmatprep.subr.bf16.mxu0 0
        %382 = vmatpush1.bf16.msra.mxu0 %v374
        %383 = vmatprep.subr.bf16.mxu0 0
        %384 = vmatpush1.bf16.msra.mxu0 %v375
        %385 = vmatprep.subr.bf16.mxu0 0
        %386 = vmatpush1.bf16.msra.mxu0 0
        %387 = vmatprep.subr.bf16.mxu0 0
        %388 = vmatpush1.bf16.msra.mxu0 0
        %389 = vmatprep.subr.bf16.mxu0 0
        %390 = vmatpush1.bf16.msra.mxu0 0
        %391 = vmatprep.subr.bf16.mxu0 0
        %392 = vmatpush1.bf16.msra.mxu0 0
        %393 = vmatprep.subr.bf16.mxu0 0
        %394 = vmatpush1.bf16.msra.mxu0 0
        %395 = vmatprep.subr.bf16.mxu0 0
        %396 = vmatpush1.bf16.msra.mxu0 0
        %397 = vmatprep.subr.bf16.mxu0 0
        %398 = vmatpush1.bf16.msra.mxu0 0
        %399 = vmatprep.subr.bf16.mxu0 0
        %400 = vmatpush1.bf16.msra.mxu0 0
        %401 = vmatprep.subr.bf16.mxu0 0
        %402 = vmatpush1.bf16.msra.mxu0 0
        %403 = vmatprep.subr.bf16.mxu0 0
        %404 = vmatpush1.bf16.msra.mxu0 0
        %405 = vmatprep.subr.bf16.mxu0 0
        %406 = vmatpush1.bf16.msra.mxu0 0
        %407 = vmatprep.subr.bf16.mxu0 0
        %408 = vmatpush1.bf16.msra.mxu0 0
        %409 = vmatprep.subr.bf16.mxu0 0
        %410 = vmatpush1.bf16.msra.mxu0 0
        %411 = vmatprep.subr.bf16.mxu0 0
        %412 = vmatpush1.bf16.msra.mxu0 0
        %413 = vmatprep.mubr.bf16.mxu0 0
        %414 = vmatmul.mubr.bf16.gmra.mrb[0].mxu0 %v379
        %v415 = vpop.f32.mrb[0].mxu0
        %v416 = vadd.f32 %v364, %v415
        %v417 = vpop.f32.mrb[0].mxu0
        %v418 = vpop.f32.mrb[0].mxu0
        %v419 = vpop.f32.mrb[0].mxu0
        %420 = vdwg.mxu0
        %v421 = vlaneseq
        %v422 = vshrl.u32 %v421, 7
        %v423 = vlaneseq
        %v424 = vand.u32 %v423, 127
        %vm425 = vcmp.le.s32.totalorder %v424, %v422
        %v426 = vsel %vm425, 0.0, -1e+09
        %v427 = vpack.c.bf16 %v416, %v416
        %429 = vrot.lane.b32.xlu0 %v427, 96
        %v430 = vpop.permute.xlu0 %429
        %vm431 = vcmask 64512
        %v433 = vsel %vm431, %v427, 0
        %v436 = vsel %vm431, %v430, 0
        %438 = vmatprep.subr.bf16.mxu0 0
        %439 = vmatpush1.bf16.xpose.msra.mxu0 %v436
        %440 = vmatprep.subr.bf16.mxu0 0
        %441 = vmatpush1.bf16.xpose.msra.mxu0 0
        %442 = vmatprep.subr.bf16.mxu0 0
        %443 = vmatpush1.bf16.xpose.msra.mxu0 0
        %444 = vmatprep.subr.bf16.mxu0 0
        %445 = vmatpush1.bf16.xpose.msra.mxu0 0
        %446 = vmatprep.subr.bf16.mxu0 0
        %447 = vmatpush1.bf16.xpose.msra.mxu0 0
        %448 = vmatprep.subr.bf16.mxu0 0
        %449 = vmatpush1.bf16.xpose.msra.mxu0 0
        %450 = vmatprep.subr.bf16.mxu0 0
        %451 = vmatpush1.bf16.xpose.msra.mxu0 0
        %452 = vmatprep.subr.bf16.mxu0 0
        %453 = vmatpush1.bf16.xpose.msra.mxu0 0
        %454 = vmatprep.subr.bf16.mxu0 0
        %455 = vmatpush1.bf16.xpose.msra.mxu0 0
        %456 = vmatprep.subr.bf16.mxu0 0
        %457 = vmatpush1.bf16.xpose.msra.mxu0 0
        %458 = vmatprep.subr.bf16.mxu0 0
        %459 = vmatpush1.bf16.xpose.msra.mxu0 0
        %460 = vmatprep.subr.bf16.mxu0 0
        %461 = vmatpush1.bf16.xpose.msra.mxu0 0
        %462 = vmatprep.subr.bf16.mxu0 0
        %463 = vmatpush1.bf16.xpose.msra.mxu0 0
        %464 = vmatprep.subr.bf16.mxu0 0
        %465 = vmatpush1.bf16.xpose.msra.mxu0 0
        %466 = vmatprep.subr.bf16.mxu0 0
        %467 = vmatpush1.bf16.xpose.msra.mxu0 0
        %468 = vmatprep.subr.bf16.mxu0 0
        %469 = vmatpush1.bf16.xpose.msra.mxu0 0
        %470 = vmatprep.mubr.bf16.mxu0 0
        %471 = vmatmul.mubr.bf16.gmra.mrb[0].mxu0 %v433
        %v472 = vpop.f32.mrb[0].mxu0
        %v473 = vadd.f32 0.0, %v472
        %v474 = vpop.f32.mrb[0].mxu0
        %v475 = vpop.f32.mrb[0].mxu0
        %v476 = vpop.f32.mrb[0].mxu0
        %477 = vdwg.mxu0
        %v478 = vmul.f32 %v473, 0.35355338
        %v479 = vadd.f32 %v478, %v426
        %v480 = vsel %vm431, %v479, -inf
        %481 = vmax.xlane.f32.xlu0 %v480
        %v482 = vpop.xlane.xlu0 %481
        %v483 = vsub.f32 %v479, %v482
        %v484 = vmul.f32 %v483, 1.442695
        %v485 = vpow.pop %v484
        %v486 = vsel %vm431, %v485, 0.0
        %487 = vadd.xlane.f32.xlu0 %v486
        %v488 = vpop.xlane.xlu0 %487
        %v489 = vrcp.pop %v488
        %v490 = vmul.f32 %v485, %v489
        %v491 = vpack.c.bf16 %v490, %v490
        %492 = vrot.lane.b32.xlu0 %v427, 64
        %v493 = vpop.permute.xlu0 %492
        %v495 = vsel %vm431, %v491, 0
        %vm497 = vcmask 1043456
        %v499 = vsel %vm497, %v493, 0
        %501 = vmatprep.subr.bf16.mxu0 0
        %502 = vmatpush1.bf16.msra.mxu0 %v499
        %503 = vmatprep.subr.bf16.mxu0 0
        %504 = vmatpush1.bf16.msra.mxu0 0
        %505 = vmatprep.subr.bf16.mxu0 0
        %506 = vmatpush1.bf16.msra.mxu0 0
        %507 = vmatprep.subr.bf16.mxu0 0
        %508 = vmatpush1.bf16.msra.mxu0 0
        %509 = vmatprep.subr.bf16.mxu0 0
        %510 = vmatpush1.bf16.msra.mxu0 0
        %511 = vmatprep.subr.bf16.mxu0 0
        %512 = vmatpush1.bf16.msra.mxu0 0
        %513 = vmatprep.subr.bf16.mxu0 0
        %514 = vmatpush1.bf16.msra.mxu0 0
        %515 = vmatprep.subr.bf16.mxu0 0
        %516 = vmatpush1.bf16.msra.mxu0 0
        %517 = vmatprep.subr.bf16.mxu0 0
        %518 = vmatpush1.bf16.msra.mxu0 0
        %519 = vmatprep.subr.bf16.mxu0 0
        %520 = vmatpush1.bf16.msra.mxu0 0
        %521 = vmatprep.subr.bf16.mxu0 0
        %522 = vmatpush1.bf16.msra.mxu0 0
        %523 = vmatprep.subr.bf16.mxu0 0
        %524 = vmatpush1.bf16.msra.mxu0 0
        %525 = vmatprep.subr.bf16.mxu0 0
        %526 = vmatpush1.bf16.msra.mxu0 0
        %527 = vmatprep.subr.bf16.mxu0 0
        %528 = vmatpush1.bf16.msra.mxu0 0
        %529 = vmatprep.subr.bf16.mxu0 0
        %530 = vmatpush1.bf16.msra.mxu0 0
        %531 = vmatprep.subr.bf16.mxu0 0
        %532 = vmatpush1.bf16.msra.mxu0 0
        %533 = vmatprep.mubr.bf16.mxu0 0
        %534 = vmatmul.mubr.bf16.gmra.mrb[0].mxu0 %v495
        %v535 = vpop.f32.mrb[0].mxu0
        %v536 = vadd.f32 0.0, %v535
        %v537 = vpop.f32.mrb[0].mxu0
        %v538 = vpop.f32.mrb[0].mxu0
        %v539 = vpop.f32.mrb[0].mxu0
        %540 = vdwg.mxu0
        %v541 = vpack.c.bf16 %v536, %v536
        %v542 = vld [vmem:[%s5] sm:$0xf]
        %543 = vrot.lane.b32.xlu0 %v427, 120
        %v544 = vpop.permute.xlu0 %543
        %545 = vrot.lane.b32.xlu0 %v427, 88
        %v546 = vpop.permute.xlu0 %545
        %v548 = vsel %vm431, %v544, 0
        %v551 = vsel %vm431, %v546, 0
        %553 = vmatprep.subr.bf16.mxu0 0
        %554 = vmatpush1.bf16.xpose.msra.mxu0 %v551
        %555 = vmatprep.subr.bf16.mxu0 0
        %556 = vmatpush1.bf16.xpose.msra.mxu0 0
        %557 = vmatprep.subr.bf16.mxu0 0
        %558 = vmatpush1.bf16.xpose.msra.mxu0 0
        %559 = vmatprep.subr.bf16.mxu0 0
        %560 = vmatpush1.bf16.xpose.msra.mxu0 0
        %561 = vmatprep.subr.bf16.mxu0 0
        %562 = vmatpush1.bf16.xpose.msra.mxu0 0
        %563 = vmatprep.subr.bf16.mxu0 0
        %564 = vmatpush1.bf16.xpose.msra.mxu0 0
        %565 = vmatprep.subr.bf16.mxu0 0
        %566 = vmatpush1.bf16.xpose.msra.mxu0 0
        %567 = vmatprep.subr.bf16.mxu0 0
        %568 = vmatpush1.bf16.xpose.msra.mxu0 0
        %569 = vmatprep.subr.bf16.mxu0 0
        %570 = vmatpush1.bf16.xpose.msra.mxu0 0
        %571 = vmatprep.subr.bf16.mxu0 0
        %572 = vmatpush1.bf16.xpose.msra.mxu0 0
        %573 = vmatprep.subr.bf16.mxu0 0
        %574 = vmatpush1.bf16.xpose.msra.mxu0 0
        %575 = vmatprep.subr.bf16.mxu0 0
        %576 = vmatpush1.bf16.xpose.msra.mxu0 0
        %577 = vmatprep.subr.bf16.mxu0 0
        %578 = vmatpush1.bf16.xpose.msra.mxu0 0
        %579 = vmatprep.subr.bf16.mxu0 0
        %580 = vmatpush1.bf16.xpose.msra.mxu0 0
        %581 = vmatprep.subr.bf16.mxu0 0
        %582 = vmatpush1.bf16.xpose.msra.mxu0 0
        %583 = vmatprep.subr.bf16.mxu0 0
        %584 = vmatpush1.bf16.xpose.msra.mxu0 0
        %585 = vmatprep.mubr.bf16.mxu0 0
        %586 = vmatmul.mubr.bf16.gmra.mrb[0].mxu0 %v548
        %v587 = vpop.f32.mrb[0].mxu0
        %v588 = vadd.f32 0.0, %v587
        %v589 = vpop.f32.mrb[0].mxu0
        %v590 = vpop.f32.mrb[0].mxu0
        %v591 = vpop.f32.mrb[0].mxu0
        %592 = vdwg.mxu0
        %v593 = vmul.f32 %v588, 0.35355338
        %v594 = vadd.f32 %v593, %v426
        %v595 = vsel %vm431, %v594, -inf
        %596 = vmax.xlane.f32.xlu0 %v595
        %v597 = vpop.xlane.xlu0 %596
        %v598 = vsub.f32 %v594, %v597
        %v599 = vmul.f32 %v598, 1.442695
        %v600 = vpow.pop %v599
        %v601 = vsel %vm431, %v600, 0.0
        %602 = vadd.xlane.f32.xlu0 %v601
        %v603 = vpop.xlane.xlu0 %602
        %v604 = vrcp.pop %v603
        %v605 = vmul.f32 %v600, %v604
        %v606 = vpack.c.bf16 %v605, %v605
        %607 = vrot.lane.b32.xlu0 %v427, 56
        %v608 = vpop.permute.xlu0 %607
        %v610 = vsel %vm431, %v606, 0
        %v613 = vsel %vm497, %v608, 0
        %615 = vmatprep.subr.bf16.mxu0 0
        %616 = vmatpush1.bf16.msra.mxu0 %v613
        %617 = vmatprep.subr.bf16.mxu0 0
        %618 = vmatpush1.bf16.msra.mxu0 0
        %619 = vmatprep.subr.bf16.mxu0 0
        %620 = vmatpush1.bf16.msra.mxu0 0
        %621 = vmatprep.subr.bf16.mxu0 0
        %622 = vmatpush1.bf16.msra.mxu0 0
        %623 = vmatprep.subr.bf16.mxu0 0
        %624 = vmatpush1.bf16.msra.mxu0 0
        %625 = vmatprep.subr.bf16.mxu0 0
        %626 = vmatpush1.bf16.msra.mxu0 0
        %627 = vmatprep.subr.bf16.mxu0 0
        %628 = vmatpush1.bf16.msra.mxu0 0
        %629 = vmatprep.subr.bf16.mxu0 0
        %630 = vmatpush1.bf16.msra.mxu0 0
        %631 = vmatprep.subr.bf16.mxu0 0
        %632 = vmatpush1.bf16.msra.mxu0 0
        %633 = vmatprep.subr.bf16.mxu0 0
        %634 = vmatpush1.bf16.msra.mxu0 0
        %635 = vmatprep.subr.bf16.mxu0 0
        %636 = vmatpush1.bf16.msra.mxu0 0
        %637 = vmatprep.subr.bf16.mxu0 0
        %638 = vmatpush1.bf16.msra.mxu0 0
        %639 = vmatprep.subr.bf16.mxu0 0
        %640 = vmatpush1.bf16.msra.mxu0 0
        %641 = vmatprep.subr.bf16.mxu0 0
        %642 = vmatpush1.bf16.msra.mxu0 0
        %643 = vmatprep.subr.bf16.mxu0 0
        %644 = vmatpush1.bf16.msra.mxu0 0
        %645 = vmatprep.subr.bf16.mxu0 0
        %646 = vmatpush1.bf16.msra.mxu0 0
        %647 = vmatprep.mubr.bf16.mxu0 0
        %648 = vmatmul.mubr.bf16.gmra.mrb[0].mxu0 %v610
        %v649 = vpop.f32.mrb[0].mxu0
        %v650 = vadd.f32 0.0, %v649
        %v651 = vpop.f32.mrb[0].mxu0
        %v652 = vpop.f32.mrb[0].mxu0
        %v653 = vpop.f32.mrb[0].mxu0
        %654 = vdwg.mxu0
        %v655 = vpack.c.bf16 %v650, %v650
        %s656 = scalar_lea.vmem %s5, 4
        %v657 = vld [vmem:[%s656] sm:$0xf]
        %v659 = vsel %vm431, %v655, 0
        %v662 = vsel %vm497, %v657, 0
        %664 = vmatprep.subr.bf16.mxu0 0
        %665 = vmatpush1.bf16.msra.mxu0 %v662
        %666 = vmatprep.subr.bf16.mxu0 0
        %667 = vmatpush1.bf16.msra.mxu0 0
        %668 = vmatprep.subr.bf16.mxu0 0
        %669 = vmatpush1.bf16.msra.mxu0 0
        %670 = vmatprep.subr.bf16.mxu0 0
        %671 = vmatpush1.bf16.msra.mxu0 0
        %672 = vmatprep.subr.bf16.mxu0 0
        %673 = vmatpush1.bf16.msra.mxu0 0
        %674 = vmatprep.subr.bf16.mxu0 0
        %675 = vmatpush1.bf16.msra.mxu0 0
        %676 = vmatprep.subr.bf16.mxu0 0
        %677 = vmatpush1.bf16.msra.mxu0 0
        %678 = vmatprep.subr.bf16.mxu0 0
        %679 = vmatpush1.bf16.msra.mxu0 0
        %680 = vmatprep.subr.bf16.mxu0 0
        %681 = vmatpush1.bf16.msra.mxu0 0
        %682 = vmatprep.subr.bf16.mxu0 0
        %683 = vmatpush1.bf16.msra.mxu0 0
        %684 = vmatprep.subr.bf16.mxu0 0
        %685 = vmatpush1.bf16.msra.mxu0 0
        %686 = vmatprep.subr.bf16.mxu0 0
        %687 = vmatpush1.bf16.msra.mxu0 0
        %688 = vmatprep.subr.bf16.mxu0 0
        %689 = vmatpush1.bf16.msra.mxu0 0
        %690 = vmatprep.subr.bf16.mxu0 0
        %691 = vmatpush1.bf16.msra.mxu0 0
        %692 = vmatprep.subr.bf16.mxu0 0
        %693 = vmatpush1.bf16.msra.mxu0 0
        %694 = vmatprep.subr.bf16.mxu0 0
        %695 = vmatpush1.bf16.msra.mxu0 0
        %696 = vmatprep.mubr.bf16.mxu0 0
        %697 = vmatmul.mubr.bf16.gmra.mrb[0].mxu0 %v659
        %v698 = vpop.f32.mrb[0].mxu0
        %v699 = vadd.f32 0.0, %v698
        %v700 = vpop.f32.mrb[0].mxu0
        %v701 = vpop.f32.mrb[0].mxu0
        %v702 = vpop.f32.mrb[0].mxu0
        %703 = vdwg.mxu0
        %v705 = vsel %vm431, %v541, 0
        %v708 = vsel %vm497, %v542, 0
        %710 = vmatprep.subr.bf16.mxu0 0
        %711 = vmatpush1.bf16.msra.mxu0 %v708
        %712 = vmatprep.subr.bf16.mxu0 0
        %713 = vmatpush1.bf16.msra.mxu0 0
        %714 = vmatprep.subr.bf16.mxu0 0
        %715 = vmatpush1.bf16.msra.mxu0 0
        %716 = vmatprep.subr.bf16.mxu0 0
        %717 = vmatpush1.bf16.msra.mxu0 0
        %718 = vmatprep.subr.bf16.mxu0 0
        %719 = vmatpush1.bf16.msra.mxu0 0
        %720 = vmatprep.subr.bf16.mxu0 0
        %721 = vmatpush1.bf16.msra.mxu0 0
        %722 = vmatprep.subr.bf16.mxu0 0
        %723 = vmatpush1.bf16.msra.mxu0 0
        %724 = vmatprep.subr.bf16.mxu0 0
        %725 = vmatpush1.bf16.msra.mxu0 0
        %726 = vmatprep.subr.bf16.mxu0 0
        %727 = vmatpush1.bf16.msra.mxu0 0
        %728 = vmatprep.subr.bf16.mxu0 0
        %729 = vmatpush1.bf16.msra.mxu0 0
        %730 = vmatprep.subr.bf16.mxu0 0
        %731 = vmatpush1.bf16.msra.mxu0 0
        %732 = vmatprep.subr.bf16.mxu0 0
        %733 = vmatpush1.bf16.msra.mxu0 0
        %734 = vmatprep.subr.bf16.mxu0 0
        %735 = vmatpush1.bf16.msra.mxu0 0
        %736 = vmatprep.subr.bf16.mxu0 0
        %737 = vmatpush1.bf16.msra.mxu0 0
        %738 = vmatprep.subr.bf16.mxu0 0
        %739 = vmatpush1.bf16.msra.mxu0 0
        %740 = vmatprep.subr.bf16.mxu0 0
        %741 = vmatpush1.bf16.msra.mxu0 0
        %742 = vmatprep.mubr.bf16.mxu0 0
        %743 = vmatmul.mubr.bf16.gmra.mrb[0].mxu0 %v705
        %v744 = vpop.f32.mrb[0].mxu0
        %v745 = vadd.f32 %v699, %v744
        %v746 = vpop.f32.mrb[0].mxu0
        %v747 = vpop.f32.mrb[0].mxu0
        %v748 = vpop.f32.mrb[0].mxu0
        %749 = vdwg.mxu0
        %750 = vrot.lane.b32.xlu0 %v427, 112
        %v751 = vpop.permute.xlu0 %750
        %752 = vrot.lane.b32.xlu0 %v427, 80
        %v753 = vpop.permute.xlu0 %752
        %v755 = vsel %vm431, %v751, 0
        %v758 = vsel %vm431, %v753, 0
        %760 = vmatprep.subr.bf16.mxu0 0
        %761 = vmatpush1.bf16.xpose.msra.mxu0 %v758
        %762 = vmatprep.subr.bf16.mxu0 0
        %763 = vmatpush1.bf16.xpose.msra.mxu0 0
        %764 = vmatprep.subr.bf16.mxu0 0
        %765 = vmatpush1.bf16.xpose.msra.mxu0 0
        %766 = vmatprep.subr.bf16.mxu0 0
        %767 = vmatpush1.bf16.xpose.msra.mxu0 0
        %768 = vmatprep.subr.bf16.mxu0 0
        %769 = vmatpush1.bf16.xpose.msra.mxu0 0
        %770 = vmatprep.subr.bf16.mxu0 0
        %771 = vmatpush1.bf16.xpose.msra.mxu0 0
        %772 = vmatprep.subr.bf16.mxu0 0
        %773 = vmatpush1.bf16.xpose.msra.mxu0 0
        %774 = vmatprep.subr.bf16.mxu0 0
        %775 = vmatpush1.bf16.xpose.msra.mxu0 0
        %776 = vmatprep.subr.bf16.mxu0 0
        %777 = vmatpush1.bf16.xpose.msra.mxu0 0
        %778 = vmatprep.subr.bf16.mxu0 0
        %779 = vmatpush1.bf16.xpose.msra.mxu0 0
        %780 = vmatprep.subr.bf16.mxu0 0
        %781 = vmatpush1.bf16.xpose.msra.mxu0 0
        %782 = vmatprep.subr.bf16.mxu0 0
        %783 = vmatpush1.bf16.xpose.msra.mxu0 0
        %784 = vmatprep.subr.bf16.mxu0 0
        %785 = vmatpush1.bf16.xpose.msra.mxu0 0
        %786 = vmatprep.subr.bf16.mxu0 0
        %787 = vmatpush1.bf16.xpose.msra.mxu0 0
        %788 = vmatprep.subr.bf16.mxu0 0
        %789 = vmatpush1.bf16.xpose.msra.mxu0 0
        %790 = vmatprep.subr.bf16.mxu0 0
        %791 = vmatpush1.bf16.xpose.msra.mxu0 0
        %792 = vmatprep.mubr.bf16.mxu0 0
        %793 = vmatmul.mubr.bf16.gmra.mrb[0].mxu0 %v755
        %v794 = vpop.f32.mrb[0].mxu0
        %v795 = vadd.f32 0.0, %v794
        %v796 = vpop.f32.mrb[0].mxu0
        %v797 = vpop.f32.mrb[0].mxu0
        %v798 = vpop.f32.mrb[0].mxu0
        %799 = vdwg.mxu0
        %v800 = vmul.f32 %v795, 0.35355338
        %v801 = vadd.f32 %v800, %v426
        %v802 = vsel %vm431, %v801, -inf
        %803 = vmax.xlane.f32.xlu0 %v802
        %v804 = vpop.xlane.xlu0 %803
        %v805 = vsub.f32 %v801, %v804
        %v806 = vmul.f32 %v805, 1.442695
        %v807 = vpow.pop %v806
        %v808 = vsel %vm431, %v807, 0.0
        %809 = vadd.xlane.f32.xlu0 %v808
        %v810 = vpop.xlane.xlu0 %809
        %v811 = vrcp.pop %v810
        %v812 = vmul.f32 %v807, %v811
        %v813 = vpack.c.bf16 %v812, %v812
        %814 = vrot.lane.b32.xlu0 %v427, 48
        %v815 = vpop.permute.xlu0 %814
        %v817 = vsel %vm431, %v813, 0
        %v820 = vsel %vm497, %v815, 0
        %822 = vmatprep.subr.bf16.mxu0 0
        %823 = vmatpush1.bf16.msra.mxu0 %v820
        %824 = vmatprep.subr.bf16.mxu0 0
        %825 = vmatpush1.bf16.msra.mxu0 0
        %826 = vmatprep.subr.bf16.mxu0 0
        %827 = vmatpush1.bf16.msra.mxu0 0
        %828 = vmatprep.subr.bf16.mxu0 0
        %829 = vmatpush1.bf16.msra.mxu0 0
        %830 = vmatprep.subr.bf16.mxu0 0
        %831 = vmatpush1.bf16.msra.mxu0 0
        %832 = vmatprep.subr.bf16.mxu0 0
        %833 = vmatpush1.bf16.msra.mxu0 0
        %834 = vmatprep.subr.bf16.mxu0 0
        %835 = vmatpush1.bf16.msra.mxu0 0
        %836 = vmatprep.subr.bf16.mxu0 0
        %837 = vmatpush1.bf16.msra.mxu0 0
        %838 = vmatprep.subr.bf16.mxu0 0
        %839 = vmatpush1.bf16.msra.mxu0 0
        %840 = vmatprep.subr.bf16.mxu0 0
        %841 = vmatpush1.bf16.msra.mxu0 0
        %842 = vmatprep.subr.bf16.mxu0 0
        %843 = vmatpush1.bf16.msra.mxu0 0
        %844 = vmatprep.subr.bf16.mxu0 0
        %845 = vmatpush1.bf16.msra.mxu0 0
        %846 = vmatprep.subr.bf16.mxu0 0
        %847 = vmatpush1.bf16.msra.mxu0 0
        %848 = vmatprep.subr.bf16.mxu0 0
        %849 = vmatpush1.bf16.msra.mxu0 0
        %850 = vmatprep.subr.bf16.mxu0 0
        %851 = vmatpush1.bf16.msra.mxu0 0
        %852 = vmatprep.subr.bf16.mxu0 0
        %853 = vmatpush1.bf16.msra.mxu0 0
        %854 = vmatprep.mubr.bf16.mxu0 0
        %855 = vmatmul.mubr.bf16.gmra.mrb[0].mxu0 %v817
        %v856 = vpop.f32.mrb[0].mxu0
        %v857 = vadd.f32 0.0, %v856
        %v858 = vpop.f32.mrb[0].mxu0
        %v859 = vpop.f32.mrb[0].mxu0
        %v860 = vpop.f32.mrb[0].mxu0
        %861 = vdwg.mxu0
        %v862 = vpack.c.bf16 %v857, %v857
        %s863 = scalar_lea.vmem %s5, 8
        %v864 = vld [vmem:[%s863] sm:$0xf]
        %v866 = vsel %vm431, %v862, 0
        %v869 = vsel %vm497, %v864, 0
        %871 = vmatprep.subr.bf16.mxu0 0
        %872 = vmatpush1.bf16.msra.mxu0 %v869
        %873 = vmatprep.subr.bf16.mxu0 0
        %874 = vmatpush1.bf16.msra.mxu0 0
        %875 = vmatprep.subr.bf16.mxu0 0
        %876 = vmatpush1.bf16.msra.mxu0 0
        %877 = vmatprep.subr.bf16.mxu0 0
        %878 = vmatpush1.bf16.msra.mxu0 0
        %879 = vmatprep.subr.bf16.mxu0 0
        %880 = vmatpush1.bf16.msra.mxu0 0
        %881 = vmatprep.subr.bf16.mxu0 0
        %882 = vmatpush1.bf16.msra.mxu0 0
        %883 = vmatprep.subr.bf16.mxu0 0
        %884 = vmatpush1.bf16.msra.mxu0 0
        %885 = vmatprep.subr.bf16.mxu0 0
        %886 = vmatpush1.bf16.msra.mxu0 0
        %887 = vmatprep.subr.bf16.mxu0 0
        %888 = vmatpush1.bf16.msra.mxu0 0
        %889 = vmatprep.subr.bf16.mxu0 0
        %890 = vmatpush1.bf16.msra.mxu0 0
        %891 = vmatprep.subr.bf16.mxu0 0
        %892 = vmatpush1.bf16.msra.mxu0 0
        %893 = vmatprep.subr.bf16.mxu0 0
        %894 = vmatpush1.bf16.msra.mxu0 0
        %895 = vmatprep.subr.bf16.mxu0 0
        %896 = vmatpush1.bf16.msra.mxu0 0
        %897 = vmatprep.subr.bf16.mxu0 0
        %898 = vmatpush1.bf16.msra.mxu0 0
        %899 = vmatprep.subr.bf16.mxu0 0
        %900 = vmatpush1.bf16.msra.mxu0 0
        %901 = vmatprep.subr.bf16.mxu0 0
        %902 = vmatpush1.bf16.msra.mxu0 0
        %903 = vmatprep.mubr.bf16.mxu0 0
        %904 = vmatmul.mubr.bf16.gmra.mrb[0].mxu0 %v866
        %v905 = vpop.f32.mrb[0].mxu0
        %v906 = vadd.f32 0.0, %v905
        %v907 = vpop.f32.mrb[0].mxu0
        %v908 = vpop.f32.mrb[0].mxu0
        %v909 = vpop.f32.mrb[0].mxu0
        %910 = vdwg.mxu0
        %v911 = vadd.f32 %v745, %v906
        %912 = vrot.lane.b32.xlu0 %v427, 104
        %v913 = vpop.permute.xlu0 %912
        %914 = vrot.lane.b32.xlu0 %v427, 72
        %v915 = vpop.permute.xlu0 %914
        %v917 = vsel %vm431, %v913, 0
        %v920 = vsel %vm431, %v915, 0
        %922 = vmatprep.subr.bf16.mxu0 0
        %923 = vmatpush1.bf16.xpose.msra.mxu0 %v920
        %924 = vmatprep.subr.bf16.mxu0 0
        %925 = vmatpush1.bf16.xpose.msra.mxu0 0
        %926 = vmatprep.subr.bf16.mxu0 0
        %927 = vmatpush1.bf16.xpose.msra.mxu0 0
        %928 = vmatprep.subr.bf16.mxu0 0
        %929 = vmatpush1.bf16.xpose.msra.mxu0 0
        %930 = vmatprep.subr.bf16.mxu0 0
        %931 = vmatpush1.bf16.xpose.msra.mxu0 0
        %932 = vmatprep.subr.bf16.mxu0 0
        %933 = vmatpush1.bf16.xpose.msra.mxu0 0
        %934 = vmatprep.subr.bf16.mxu0 0
        %935 = vmatpush1.bf16.xpose.msra.mxu0 0
        %936 = vmatprep.subr.bf16.mxu0 0
        %937 = vmatpush1.bf16.xpose.msra.mxu0 0
        %938 = vmatprep.subr.bf16.mxu0 0
        %939 = vmatpush1.bf16.xpose.msra.mxu0 0
        %940 = vmatprep.subr.bf16.mxu0 0
        %941 = vmatpush1.bf16.xpose.msra.mxu0 0
        %942 = vmatprep.subr.bf16.mxu0 0
        %943 = vmatpush1.bf16.xpose.msra.mxu0 0
        %944 = vmatprep.subr.bf16.mxu0 0
        %945 = vmatpush1.bf16.xpose.msra.mxu0 0
        %946 = vmatprep.subr.bf16.mxu0 0
        %947 = vmatpush1.bf16.xpose.msra.mxu0 0
        %948 = vmatprep.subr.bf16.mxu0 0
        %949 = vmatpush1.bf16.xpose.msra.mxu0 0
        %950 = vmatprep.subr.bf16.mxu0 0
        %951 = vmatpush1.bf16.xpose.msra.mxu0 0
        %952 = vmatprep.subr.bf16.mxu0 0
        %953 = vmatpush1.bf16.xpose.msra.mxu0 0
        %954 = vmatprep.mubr.bf16.mxu0 0
        %955 = vmatmul.mubr.bf16.gmra.mrb[0].mxu0 %v917
        %v956 = vpop.f32.mrb[0].mxu0
        %v957 = vadd.f32 0.0, %v956
        %v958 = vpop.f32.mrb[0].mxu0
        %v959 = vpop.f32.mrb[0].mxu0
        %v960 = vpop.f32.mrb[0].mxu0
        %961 = vdwg.mxu0
        %v962 = vmul.f32 %v957, 0.35355338
        %v963 = vadd.f32 %v962, %v426
        %v964 = vsel %vm431, %v963, -inf
        %965 = vmax.xlane.f32.xlu0 %v964
        %v966 = vpop.xlane.xlu0 %965
        %v967 = vsub.f32 %v963, %v966
        %v968 = vmul.f32 %v967, 1.442695
        %v969 = vpow.pop %v968
        %v970 = vsel %vm431, %v969, 0.0
        %971 = vadd.xlane.f32.xlu0 %v970
        %v972 = vpop.xlane.xlu0 %971
        %v973 = vrcp.pop %v972
        %v974 = vmul.f32 %v969, %v973
        %v975 = vpack.c.bf16 %v974, %v974
        %976 = vrot.lane.b32.xlu0 %v427, 40
        %v977 = vpop.permute.xlu0 %976
        %v979 = vsel %vm431, %v975, 0
        %v982 = vsel %vm497, %v977, 0
        %984 = vmatprep.subr.bf16.mxu0 0
        %985 = vmatpush1.bf16.msra.mxu0 %v982
        %986 = vmatprep.subr.bf16.mxu0 0
        %987 = vmatpush1.bf16.msra.mxu0 0
        %988 = vmatprep.subr.bf16.mxu0 0
        %989 = vmatpush1.bf16.msra.mxu0 0
        %990 = vmatprep.subr.bf16.mxu0 0
        %991 = vmatpush1.bf16.msra.mxu0 0
        %992 = vmatprep.subr.bf16.mxu0 0
        %993 = vmatpush1.bf16.msra.mxu0 0
        %994 = vmatprep.subr.bf16.mxu0 0
        %995 = vmatpush1.bf16.msra.mxu0 0
        %996 = vmatprep.subr.bf16.mxu0 0
        %997 = vmatpush1.bf16.msra.mxu0 0
        %998 = vmatprep.subr.bf16.mxu0 0
        %999 = vmatpush1.bf16.msra.mxu0 0
        %1000 = vmatprep.subr.bf16.mxu0 0
        %1001 = vmatpush1.bf16.msra.mxu0 0
        %1002 = vmatprep.subr.bf16.mxu0 0
        %1003 = vmatpush1.bf16.msra.mxu0 0
        %1004 = vmatprep.subr.bf16.mxu0 0
        %1005 = vmatpush1.bf16.msra.mxu0 0
        %1006 = vmatprep.subr.bf16.mxu0 0
        %1007 = vmatpush1.bf16.msra.mxu0 0
        %1008 = vmatprep.subr.bf16.mxu0 0
        %1009 = vmatpush1.bf16.msra.mxu0 0
        %1010 = vmatprep.subr.bf16.mxu0 0
        %1011 = vmatpush1.bf16.msra.mxu0 0
        %1012 = vmatprep.subr.bf16.mxu0 0
        %1013 = vmatpush1.bf16.msra.mxu0 0
        %1014 = vmatprep.subr.bf16.mxu0 0
        %1015 = vmatpush1.bf16.msra.mxu0 0
        %1016 = vmatprep.mubr.bf16.mxu0 0
        %1017 = vmatmul.mubr.bf16.gmra.mrb[0].mxu0 %v979
        %v1018 = vpop.f32.mrb[0].mxu0
        %v1019 = vadd.f32 0.0, %v1018
        %v1020 = vpop.f32.mrb[0].mxu0
        %v1021 = vpop.f32.mrb[0].mxu0
        %v1022 = vpop.f32.mrb[0].mxu0
        %1023 = vdwg.mxu0
        %v1024 = vpack.c.bf16 %v1019, %v1019
        %s1025 = scalar_lea.vmem %s5, 12
        %v1026 = vld [vmem:[%s1025] sm:$0xf]
        %v1028 = vsel %vm431, %v1024, 0
        %v1031 = vsel %vm497, %v1026, 0
        %1033 = vmatprep.subr.bf16.mxu0 0
        %1034 = vmatpush1.bf16.msra.mxu0 %v1031
        %1035 = vmatprep.subr.bf16.mxu0 0
        %1036 = vmatpush1.bf16.msra.mxu0 0
        %1037 = vmatprep.subr.bf16.mxu0 0
        %1038 = vmatpush1.bf16.msra.mxu0 0
        %1039 = vmatprep.subr.bf16.mxu0 0
        %1040 = vmatpush1.bf16.msra.mxu0 0
        %1041 = vmatprep.subr.bf16.mxu0 0
        %1042 = vmatpush1.bf16.msra.mxu0 0
        %1043 = vmatprep.subr.bf16.mxu0 0
        %1044 = vmatpush1.bf16.msra.mxu0 0
        %1045 = vmatprep.subr.bf16.mxu0 0
        %1046 = vmatpush1.bf16.msra.mxu0 0
        %1047 = vmatprep.subr.bf16.mxu0 0
        %1048 = vmatpush1.bf16.msra.mxu0 0
        %1049 = vmatprep.subr.bf16.mxu0 0
        %1050 = vmatpush1.bf16.msra.mxu0 0
        %1051 = vmatprep.subr.bf16.mxu0 0
        %1052 = vmatpush1.bf16.msra.mxu0 0
        %1053 = vmatprep.subr.bf16.mxu0 0
        %1054 = vmatpush1.bf16.msra.mxu0 0
        %1055 = vmatprep.subr.bf16.mxu0 0
        %1056 = vmatpush1.bf16.msra.mxu0 0
        %1057 = vmatprep.subr.bf16.mxu0 0
        %1058 = vmatpush1.bf16.msra.mxu0 0
        %1059 = vmatprep.subr.bf16.mxu0 0
        %1060 = vmatpush1.bf16.msra.mxu0 0
        %1061 = vmatprep.subr.bf16.mxu0 0
        %1062 = vmatpush1.bf16.msra.mxu0 0
        %1063 = vmatprep.subr.bf16.mxu0 0
        %1064 = vmatpush1.bf16.msra.mxu0 0
        %1065 = vmatprep.mubr.bf16.mxu0 0
        %1066 = vmatmul.mubr.bf16.gmra.mrb[0].mxu0 %v1028
        %v1067 = vpop.f32.mrb[0].mxu0
        %v1068 = vadd.f32 0.0, %v1067
        %v1069 = vpop.f32.mrb[0].mxu0
        %v1070 = vpop.f32.mrb[0].mxu0
        %v1071 = vpop.f32.mrb[0].mxu0
        %1072 = vdwg.mxu0
        %v1073 = vadd.f32 %v911, %v1068
        %v1074 = vadd.f32 %v322, %v1073
        %v1075 = vld [vmem:[%s6] sm:$0x1]
        %v1077 = vlaneseq
        %v1078 = vshrl.u32 %v1077, 7
        %v1079 = vsub.s32 0, %v1078
        %v1080 = vrot.slane %v1075, %v1079
        %v1082 = vadd.f32 %v1074, %v1080
        %1083 = vst.msk [vmem:[%s320] sm:$0xff] %vm323, %v1082
        %s1084 = sand.u32 %s185, 1
        %s1085 = scalar_lea.sflag [#allocation4], %s1084
        %s1086 = sand.u32 %s185, 1
        %s1087 = smul.addr %s1086, 8
        %s1088 = scalar_lea.vmem [#allocation8], %s1087
        // Predicated region
        $region61: #{tpu_custom_call.1} parent=47 // pred_check
          %p1089 = pneg %p195
        $region62: #{tpu_custom_call.1} parent=47 // pred_check_branch
          %1091 = sbr.rel (%p1089) target = $region64
        $region63: #{tpu_custom_call.1} parent=47 // pred_region
          %s1093 = ssub.s32 128, 128
          %1094 = vsyncadd %s1085, %s1093
          %s1095 = smul.addr %s25, 128
          %s1096 = scalar_lea.hbm %s7, %s1095
          %s1098 = sshll.u32 %s1088, 4
          %s1099 = int_to_ptr.vmem [resolvable:$true] %s1098
          %1101 = dma.vmem_to_hbm [thread:$0]  %s1099, 128, %s1096, %s1085
        $region64: #{tpu_custom_call.1} parent=47 // pred_fallthru
          _
      $region48: #{tpu_custom_call.1} parent=5 // pred_fallthru
        _
      %p1102 = scmp.le.s32.totalorder 2, %s20
      // Predicated region
      $region65: #{tpu_custom_call.1} parent=5 // pred_check
        %p1103 = pneg %p1102
      $region66: #{tpu_custom_call.1} parent=5 // pred_check_branch
        %1105 = sbr.rel (%p1103) target = $region68
      $region67: #{tpu_custom_call.1} parent=5 // pred_region
        %s1106 = ssub.s32 %s20, 2
        // Predicated region
        $region69: #{tpu_custom_call.1} parent=67 // pred_check
          %p1107 = pneg %p201
        $region70: #{tpu_custom_call.1} parent=67 // pred_check_branch
          %1109 = sbr.rel (%p1107) target = $region72
        $region71: #{tpu_custom_call.1} parent=67 // pred_region
          %s1110 = sand.u32 %s186, 1
          %s1111 = scalar_lea.sflag [#allocation4], %s1110
          %s1112 = sand.u32 %s186, 1
          %s1113 = smul.addr %s1112, 8
          %s1114 = scalar_lea.vmem [#allocation8], %s1113
          %1115 = dma.done %s1111, 128
        $region72: #{tpu_custom_call.1} parent=67 // pred_fallthru
          _
      $region68: #{tpu_custom_call.1} parent=5 // pred_fallthru
        _
    $region6: #{tpu_custom_call.1} parent=1 // loop_footer
      %s24 = sadd.s32 1, %s20
    $region7: #{tpu_custom_call.1} parent=1 // loop_footer_branch
      %19 = sbr.rel target = $region3
    $region8: #{tpu_custom_call.1} parent=1 // loop_exit
      _
    %1116 = vsyncpa [#allocation3], 1
    %s1117 = scalar_lea.sflag [#allocation3], 1
    %1118 = vsyncpa %s1117, 1
    %1119 = vsyncpa [#allocation6], 1
    %1120 = vsyncpa [#allocation4], 1
    %s1121 = scalar_lea.sflag [#allocation4], 1
    %1122 = vsyncpa %s1121, 1

</llo_original>
